<compile_context>
chip_gen: v7x
topology: tpu7x:2x2x1
jax: 0.10.0
libtpu: 0.0.40
codegen_flags: <defaults>
</compile_context>

<pallas_src>
import jax
import jax.numpy as jnp
from jax.experimental import pallas as pl
from jax.experimental.pallas import tpu as pltpu


def _gelu_tanh(x):
    # tanh-approximate GELU (tanh runs on the EUP slot).
    # TODO(synk): PyTorch nn.GELU() defaults to the exact erf form; the tanh
    # approximation used here differs by ~1e-3 max abs.
    c = jnp.float32(0.7978845608028654)  # sqrt(2/pi)
    return 0.5 * x * (1.0 + jnp.tanh(c * (x + 0.044715 * x * x * x)))


def _mlpblock_kernel(
    x_ref,       # (Bblk, N, D)  activations
    alpha1_ref,  # (1, D)  f32
    beta1_ref,   # (1, D)  f32
    gamma1_ref,  # (1, D)  f32
    gbt_ref,     # (N, D)  f32   gamma_1 * token-mix bias (folded host-side)
    wt_ref,      # (N, N)  bf16  token-mix weight (PyTorch layout)
    alpha2_ref,  # (1, D)  f32
    beta2_ref,   # (1, D)  f32
    gamma2_ref,  # (1, D)  f32
    w1_ref,      # (H, D)  bf16  ff Linear(D->H) weight, stored PyTorch layout
    b1_ref,      # (1, H)  f32
    w2_ref,      # (D, H)  bf16  ff Linear(H->D) weight, stored PyTorch layout
    b2_ref,      # (1, D)  f32
    o_ref,       # (Bblk, N, D)
):
    bblk, n, d = x_ref.shape
    m = bblk * n
    f32 = jnp.float32

    # ---- pre_affine (2-D view: D on lanes, rows = Bblk*N sublanes) ----
    x2 = x_ref[...].reshape(m, d).astype(f32)
    x_pre2 = x2 * alpha1_ref[...] + beta1_ref[...]                     # (M, D)

    # ---- token_mix: per-sample Linear over the token axis N (MXU) ----
    x_pre3 = x_pre2.reshape(bblk, n, d)
    wt_b = jnp.broadcast_to(wt_ref[...], (bblk, n, n))
    tm3 = jnp.einsum("bnm,bmd->bnd", wt_b, x_pre3.astype(wt_ref.dtype),
                     preferred_element_type=f32)                       # (Bblk, N, D)
    # residual + layerscale; gamma_1 * b_t already folded into gbt.
    x1_3 = x_pre3 + gamma1_ref[...] * tm3 + gbt_ref[...]
    x1_2 = x1_3.reshape(m, d)

    # ---- post_affine ----
    x_post2 = x1_2 * alpha2_ref[...] + beta2_ref[...]                  # (M, D)

    # ---- FeedForward: Linear(D->H) -> GELU -> Linear(H->D) (MXU, bf16 ops,
    #      f32 accumulation; stored weight layouts consumed directly) ----
    h = jax.lax.dot_general(
        x_post2.astype(w1_ref.dtype), w1_ref[...],
        dimension_numbers=(((1,), (1,)), ((), ())),
        preferred_element_type=f32) + b1_ref[...]                      # (M, H)
    h = _gelu_tanh(h)
    ff = jax.lax.dot_general(
        h.astype(w2_ref.dtype), w2_ref[...],
        dimension_numbers=(((1,), (1,)), ((), ())),
        preferred_element_type=f32) + b2_ref[...]                      # (M, D)

    out2 = x_post2 + gamma2_ref[...] * ff                              # residual + layerscale
    o_ref[...] = out2.reshape(bblk, n, d).astype(o_ref.dtype)


def prepare_params(alpha1, beta1, gamma1, wt, bt, alpha2, beta2, gamma2,
                   w1, b1, w2, b2, *, compute_dtype=jnp.bfloat16):
    """One-time parameter prep (hoist outside the hot path / do at load time):
    reshape 1-D vectors to lane-dense rows, fold gamma_1 into the token-mix
    bias, and cast the matmul weights to the MXU compute dtype (bf16)."""
    d = gamma1.shape[0]
    n = wt.shape[0]
    hdim = w1.shape[0]
    f32 = jnp.float32
    return dict(
        alpha1=alpha1.reshape(1, d).astype(f32),
        beta1=beta1.reshape(1, d).astype(f32),
        gamma1=gamma1.reshape(1, d).astype(f32),
        gbt=(bt.reshape(n, 1) * gamma1.reshape(1, d)).astype(f32),   # (N, D)
        wt=wt.astype(compute_dtype),
        alpha2=alpha2.reshape(1, d).astype(f32),
        beta2=beta2.reshape(1, d).astype(f32),
        gamma2=gamma2.reshape(1, d).astype(f32),
        w1=w1.astype(compute_dtype),
        b1=b1.reshape(1, hdim).astype(f32),
        w2=w2.astype(compute_dtype),
        b2=b2.reshape(1, d).astype(f32),
    )


def _pick_block_b(batch, n):
    """Largest divisor of `batch` such that Bblk*N ~ 256 MXU rows, while
    keeping the grid length >= 2 so the 'parallel' axis still shards over the
    two v7x TensorCores."""
    target = max(1, 256 // max(n, 1))
    cap = target if batch < 2 else max(1, min(target, batch // 2))
    best = 1
    for div in range(1, min(cap, batch) + 1):
        if batch % div == 0:
            best = div
    return best


def mlp_block(x, params, *, block_b=None):
    """Fused MLPblock forward.  x: (B, N, D); params: output of prepare_params."""
    batch, n, d = x.shape
    hdim = params["b1"].shape[1]
    bblk = block_b if block_b is not None else _pick_block_b(batch, n)
    assert batch % bblk == 0, (batch, bblk)
    grid = (batch // bblk,)

    const2 = lambda shape: pl.BlockSpec(shape, lambda i: (0, 0))

    order = ("alpha1", "beta1", "gamma1", "gbt", "wt",
             "alpha2", "beta2", "gamma2", "w1", "b1", "w2", "b2")
    p = [params[k] for k in order]
    param_bytes = sum(int(a.size) * a.dtype.itemsize for a in p)

    # Advisory cost for XLA's scheduler around the custom call.
    flops = 2 * batch * n * n * d + 4 * batch * n * d * hdim
    cost = pl.CostEstimate(
        flops=flops,
        transcendentals=batch * n * hdim,
        bytes_accessed=2 * int(x.size) * x.dtype.itemsize + param_bytes,
    )

    # Explicit scoped-VMEM budget (generous; v5e default is only 16 MiB).
    act = bblk * n * d * 4
    est = 4 * (2 * act) + 2 * param_bytes + 10 * act + 4 * bblk * n * hdim * 4
    vmem_limit = int(min(48 * 2**20, max(32 * 2**20, 4 * est)))

    return pl.pallas_call(
        _mlpblock_kernel,
        out_shape=jax.ShapeDtypeStruct((batch, n, d), x.dtype),
        grid=grid,
        in_specs=[
            pl.BlockSpec((bblk, n, d), lambda i: (i, 0, 0)),   # x: Bblk rows per step
            const2((1, d)),       # alpha1
            const2((1, d)),       # beta1
            const2((1, d)),       # gamma1
            const2((n, d)),       # gamma1 * bt (lane-dense)
            const2((n, n)),       # wt
            const2((1, d)),       # alpha2
            const2((1, d)),       # beta2
            const2((1, d)),       # gamma2
            const2((hdim, d)),    # w1 (stored layout)
            const2((1, hdim)),    # b1
            const2((d, hdim)),    # w2 (stored layout)
            const2((1, d)),       # b2
        ],
        out_specs=pl.BlockSpec((bblk, n, d), lambda i: (i, 0, 0)),
        compiler_params=pltpu.CompilerParams(
            dimension_semantics=("parallel",),   # shard batch blocks over TCs (v7x)
            vmem_limit_bytes=vmem_limit,
        ),
        cost_estimate=cost,
    )(x, *p)


def _reference(x, alpha1, beta1, gamma1, wt, bt, alpha2, beta2, gamma2,
               w1, b1, w2, b2):
    """Pure-JAX f32 reference with identical semantics (same GELU approx)."""
    x = x * alpha1 + beta1
    tm = jnp.einsum("bmd,nm->bnd", x, wt) + bt[None, :, None]
    x = x + gamma1 * tm
    x = x * alpha2 + beta2
    hh = _gelu_tanh(jnp.einsum("bnd,hd->bnh", x, w1) + b1)
    ff = jnp.einsum("bnh,dh->bnd", hh, w2) + b2
    return x + gamma2 * ff


if __name__ == "__main__":
    # Lane-dense demo shapes: D, H multiples of 128; N multiple of 8; B large
    # enough that Bblk=16 gives Bblk*N=256 MXU rows and a 2-step grid.
    B, N, D, H = 32, 16, 128, 256
    init_values = 1e-4

    key = jax.random.PRNGKey(0)
    k = jax.random.split(key, 8)
    x = jax.random.normal(k[0], (B, N, D), dtype=jnp.float32)

    # Aff params exactly as nn.Parameter init: alpha = ones, beta = zeros.
    alpha1 = jnp.ones((1, 1, D), jnp.float32)
    beta1 = jnp.zeros((1, 1, D), jnp.float32)
    alpha2 = jnp.ones((1, 1, D), jnp.float32)
    beta2 = jnp.zeros((1, 1, D), jnp.float32)
    gamma1 = init_values * jnp.ones((D,), jnp.float32)
    gamma2 = init_values * jnp.ones((D,), jnp.float32)

    # Linear weights/biases (deterministic random stand-ins for trained params).
    wt = 0.1 * jax.random.normal(k[1], (N, N), jnp.float32)
    bt = 0.1 * jax.random.normal(k[2], (N,), jnp.float32)
    w1 = 0.1 * jax.random.normal(k[3], (H, D), jnp.float32)
    b1 = 0.1 * jax.random.normal(k[4], (H,), jnp.float32)
    w2 = 0.1 * jax.random.normal(k[5], (D, H), jnp.float32)
    b2 = 0.1 * jax.random.normal(k[6], (D,), jnp.float32)

    # One-time parameter prep (hoisted out of the hot path).
    params = prepare_params(alpha1, beta1, gamma1, wt, bt, alpha2, beta2,
                            gamma2, w1, b1, w2, b2)

    out = jax.block_until_ready(mlp_block(x, params))

    ref = _reference(x, alpha1, beta1, gamma1, wt, bt, alpha2, beta2, gamma2,
                     w1, b1, w2, b2)

    assert out.shape == ref.shape
    out_f32 = out.astype(jnp.float32)
    err = float(jnp.max(jnp.abs(out_f32 - ref)))
    assert bool(jnp.allclose(out_f32, ref, atol=2e-3, rtol=2e-3)), \
        f"mismatch vs reference: max abs err {err}"

    print("KERNEL_OK")
</pallas_src>

<mosaic_0001>
module attributes {stable_mosaic.version = 11 : i64} {
  func.func @_mlpblock_kernel(%arg0: i32, %arg1: memref<16x16x128xf32, #tpu.memory_space<vmem>>, %arg2: memref<1x128xf32, #tpu.memory_space<vmem>>, %arg3: memref<1x128xf32, #tpu.memory_space<vmem>>, %arg4: memref<1x128xf32, #tpu.memory_space<vmem>>, %arg5: memref<16x128xf32, #tpu.memory_space<vmem>>, %arg6: memref<16x16xbf16, #tpu.memory_space<vmem>>, %arg7: memref<1x128xf32, #tpu.memory_space<vmem>>, %arg8: memref<1x128xf32, #tpu.memory_space<vmem>>, %arg9: memref<1x128xf32, #tpu.memory_space<vmem>>, %arg10: memref<256x128xbf16, #tpu.memory_space<vmem>>, %arg11: memref<1x256xf32, #tpu.memory_space<vmem>>, %arg12: memref<128x256xbf16, #tpu.memory_space<vmem>>, %arg13: memref<1x128xf32, #tpu.memory_space<vmem>>, %arg14: memref<16x16x128xf32, #tpu.memory_space<vmem>>) attributes {dimension_semantics = [#tpu.dimension_semantics<parallel>], iteration_bounds = array<i64: 2>, scalar_prefetch = 0 : i64, scratch_operands = 0 : i64, tpu.core_type = #tpu.core_type<tc>, window_params = [{transform_indices = @transform_0, window_bounds = array<i64: 16, 16, 128>}, {pipeline_mode = #tpu.pipeline_mode<synchronous>, transform_indices = @transform_1, window_bounds = array<i64: 1, 128>}, {pipeline_mode = #tpu.pipeline_mode<synchronous>, transform_indices = @transform_2, window_bounds = array<i64: 1, 128>}, {pipeline_mode = #tpu.pipeline_mode<synchronous>, transform_indices = @transform_3, window_bounds = array<i64: 1, 128>}, {pipeline_mode = #tpu.pipeline_mode<synchronous>, transform_indices = @transform_4, window_bounds = array<i64: 16, 128>}, {pipeline_mode = #tpu.pipeline_mode<synchronous>, transform_indices = @transform_5, window_bounds = array<i64: 16, 16>}, {pipeline_mode = #tpu.pipeline_mode<synchronous>, transform_indices = @transform_6, window_bounds = array<i64: 1, 128>}, {pipeline_mode = #tpu.pipeline_mode<synchronous>, transform_indices = @transform_7, window_bounds = array<i64: 1, 128>}, {pipeline_mode = #tpu.pipeline_mode<synchronous>, transform_indices = @transform_8, window_bounds = array<i64: 1, 128>}, {pipeline_mode = #tpu.pipeline_mode<synchronous>, transform_indices = @transform_9, window_bounds = array<i64: 256, 128>}, {pipeline_mode = #tpu.pipeline_mode<synchronous>, transform_indices = @transform_10, window_bounds = array<i64: 1, 256>}, {pipeline_mode = #tpu.pipeline_mode<synchronous>, transform_indices = @transform_11, window_bounds = array<i64: 128, 256>}, {pipeline_mode = #tpu.pipeline_mode<synchronous>, transform_indices = @transform_12, window_bounds = array<i64: 1, 128>}, {transform_indices = @transform_13, window_bounds = array<i64: 16, 16, 128>}]} {
    %c0 = arith.constant 0 : index
    %c0_0 = arith.constant 0 : index
    %c0_1 = arith.constant 0 : index
    %0 = vector.load %arg1[%c0, %c0_0, %c0_1] : memref<16x16x128xf32, #tpu.memory_space<vmem>>, vector<16x16x128xf32>
    %1 = vector.shape_cast %0 : vector<16x16x128xf32> to vector<256x128xf32>
    %c0_2 = arith.constant 0 : index
    %c0_3 = arith.constant 0 : index
    %2 = vector.load %arg2[%c0_2, %c0_3] : memref<1x128xf32, #tpu.memory_space<vmem>>, vector<1x128xf32>
    %3 = vector.broadcast %2 : vector<1x128xf32> to vector<256x128xf32>
    %4 = arith.mulf %1, %3 : vector<256x128xf32>
    %c0_4 = arith.constant 0 : index
    %c0_5 = arith.constant 0 : index
    %5 = vector.load %arg3[%c0_4, %c0_5] : memref<1x128xf32, #tpu.memory_space<vmem>>, vector<1x128xf32>
    %6 = vector.broadcast %5 : vector<1x128xf32> to vector<256x128xf32>
    %7 = arith.addf %4, %6 : vector<256x128xf32>
    %8 = vector.shape_cast %7 : vector<256x128xf32> to vector<16x16x128xf32>
    %c0_6 = arith.constant 0 : index
    %c0_7 = arith.constant 0 : index
    %9 = vector.load %arg6[%c0_6, %c0_7] : memref<16x16xbf16, #tpu.memory_space<vmem>>, vector<16x16xbf16>
    %10 = vector.shape_cast %9 : vector<16x16xbf16> to vector<1x16x16xbf16>
    %11 = vector.broadcast %10 : vector<1x16x16xbf16> to vector<16x16x16xbf16>
    %12 = arith.truncf %8 : vector<16x16x128xf32> to vector<16x16x128xbf16>
    "tpu.trace_start"() <{level = 10 : i32, message = "bnm,bmd->bnd"}> : () -> ()
    %cst = arith.constant dense<0.000000e+00> : vector<16x16x128xf32>
    %13 = tpu.matmul %11, %12, %cst {dimension_numbers = #tpu.dot_dimension_numbers<[2], [1], [1], [2], [0, 0, 0, 1, 1, 2], [0], [0]>} : vector<16x16x16xbf16>, vector<16x16x128xbf16>, vector<16x16x128xf32> -> vector<16x16x128xf32>
    "tpu.trace_stop"() : () -> ()
    %c0_8 = arith.constant 0 : index
    %c0_9 = arith.constant 0 : index
    %14 = vector.load %arg4[%c0_8, %c0_9] : memref<1x128xf32, #tpu.memory_space<vmem>>, vector<1x128xf32>
    %15 = vector.shape_cast %14 : vector<1x128xf32> to vector<1x1x128xf32>
    %16 = vector.broadcast %15 : vector<1x1x128xf32> to vector<16x16x128xf32>
    %17 = arith.mulf %16, %13 : vector<16x16x128xf32>
    %18 = arith.addf %8, %17 : vector<16x16x128xf32>
    %c0_10 = arith.constant 0 : index
    %c0_11 = arith.constant 0 : index
    %19 = vector.load %arg5[%c0_10, %c0_11] : memref<16x128xf32, #tpu.memory_space<vmem>>, vector<16x128xf32>
    %20 = vector.shape_cast %19 : vector<16x128xf32> to vector<1x16x128xf32>
    %21 = vector.broadcast %20 : vector<1x16x128xf32> to vector<16x16x128xf32>
    %22 = arith.addf %18, %21 : vector<16x16x128xf32>
    %23 = vector.shape_cast %22 : vector<16x16x128xf32> to vector<256x128xf32>
    %c0_12 = arith.constant 0 : index
    %c0_13 = arith.constant 0 : index
    %24 = vector.load %arg7[%c0_12, %c0_13] : memref<1x128xf32, #tpu.memory_space<vmem>>, vector<1x128xf32>
    %25 = vector.broadcast %24 : vector<1x128xf32> to vector<256x128xf32>
    %26 = arith.mulf %23, %25 : vector<256x128xf32>
    %c0_14 = arith.constant 0 : index
    %c0_15 = arith.constant 0 : index
    %27 = vector.load %arg8[%c0_14, %c0_15] : memref<1x128xf32, #tpu.memory_space<vmem>>, vector<1x128xf32>
    %28 = vector.broadcast %27 : vector<1x128xf32> to vector<256x128xf32>
    %29 = arith.addf %26, %28 : vector<256x128xf32>
    %30 = arith.truncf %29 : vector<256x128xf32> to vector<256x128xbf16>
    %c0_16 = arith.constant 0 : index
    %c0_17 = arith.constant 0 : index
    %31 = vector.load %arg10[%c0_16, %c0_17] : memref<256x128xbf16, #tpu.memory_space<vmem>>, vector<256x128xbf16>
    %cst_18 = arith.constant dense<0.000000e+00> : vector<256x256xf32>
    %32 = tpu.matmul %30, %31, %cst_18 {dimension_numbers = #tpu.dot_dimension_numbers<[1], [1], [0], [0], [0, 0, 1, 0], [], []>} : vector<256x128xbf16>, vector<256x128xbf16>, vector<256x256xf32> -> vector<256x256xf32>
    %c0_19 = arith.constant 0 : index
    %c0_20 = arith.constant 0 : index
    %33 = vector.load %arg11[%c0_19, %c0_20] : memref<1x256xf32, #tpu.memory_space<vmem>>, vector<1x256xf32>
    %34 = vector.broadcast %33 : vector<1x256xf32> to vector<256x256xf32>
    %35 = arith.addf %32, %34 : vector<256x256xf32>
    %cst_21 = arith.constant 5.000000e-01 : f32
    %36 = vector.broadcast %cst_21 : f32 to vector<256x256xf32>
    %37 = arith.mulf %36, %35 : vector<256x256xf32>
    %cst_22 = arith.constant 4.471500e-02 : f32
    %38 = vector.broadcast %cst_22 : f32 to vector<256x256xf32>
    %39 = arith.mulf %38, %35 : vector<256x256xf32>
    %40 = arith.mulf %39, %35 : vector<256x256xf32>
    %41 = arith.mulf %40, %35 : vector<256x256xf32>
    %42 = arith.addf %35, %41 : vector<256x256xf32>
    %cst_23 = arith.constant 0.797884583 : f32
    %43 = vector.broadcast %cst_23 : f32 to vector<256x256xf32>
    %44 = arith.mulf %43, %42 : vector<256x256xf32>
    %45 = math.tanh %44 : vector<256x256xf32>
    %cst_24 = arith.constant 1.000000e+00 : f32
    %46 = vector.broadcast %cst_24 : f32 to vector<256x256xf32>
    %47 = arith.addf %46, %45 : vector<256x256xf32>
    %48 = arith.mulf %37, %47 : vector<256x256xf32>
    %49 = arith.truncf %48 : vector<256x256xf32> to vector<256x256xbf16>
    %c0_25 = arith.constant 0 : index
    %c0_26 = arith.constant 0 : index
    %50 = vector.load %arg12[%c0_25, %c0_26] : memref<128x256xbf16, #tpu.memory_space<vmem>>, vector<128x256xbf16>
    %cst_27 = arith.constant dense<0.000000e+00> : vector<256x128xf32>
    %51 = tpu.matmul %49, %50, %cst_27 {dimension_numbers = #tpu.dot_dimension_numbers<[1], [1], [0], [0], [0, 0, 1, 0], [], []>} : vector<256x256xbf16>, vector<128x256xbf16>, vector<256x128xf32> -> vector<256x128xf32>
    %c0_28 = arith.constant 0 : index
    %c0_29 = arith.constant 0 : index
    %52 = vector.load %arg13[%c0_28, %c0_29] : memref<1x128xf32, #tpu.memory_space<vmem>>, vector<1x128xf32>
    %53 = vector.broadcast %52 : vector<1x128xf32> to vector<256x128xf32>
    %54 = arith.addf %51, %53 : vector<256x128xf32>
    %c0_30 = arith.constant 0 : index
    %c0_31 = arith.constant 0 : index
    %55 = vector.load %arg9[%c0_30, %c0_31] : memref<1x128xf32, #tpu.memory_space<vmem>>, vector<1x128xf32>
    %56 = vector.broadcast %55 : vector<1x128xf32> to vector<256x128xf32>
    %57 = arith.mulf %56, %54 : vector<256x128xf32>
    %58 = arith.addf %29, %57 : vector<256x128xf32>
    %59 = vector.shape_cast %58 : vector<256x128xf32> to vector<16x16x128xf32>
    %c0_32 = arith.constant 0 : index
    %c0_33 = arith.constant 0 : index
    %c0_34 = arith.constant 0 : index
    %60 = vector.load %arg14[%c0_32, %c0_33, %c0_34] : memref<16x16x128xf32, #tpu.memory_space<vmem>>, vector<16x16x128xf32>
    tpu.vector_store %arg14[%c0_32, %c0_33, %c0_34], %59 {strides = array<i32>} : memref<16x16x128xf32, #tpu.memory_space<vmem>>, vector<16x16x128xf32>,
    return
  }
  func.func @transform_0(%arg0: i32) -> (i32, i32, i32) {
    %c0_i32 = arith.constant 0 : i32
    %c0_i32_0 = arith.constant 0 : i32
    %c0_i32_1 = arith.constant 0 : i32
    return %arg0, %c0_i32, %c0_i32_0 : i32, i32, i32
  }
  func.func @transform_1(%arg0: i32) -> (i32, i32) {
    %c0_i32 = arith.constant 0 : i32
    %c0_i32_0 = arith.constant 0 : i32
    %c0_i32_1 = arith.constant 0 : i32
    return %c0_i32, %c0_i32_0 : i32, i32
  }
  func.func @transform_2(%arg0: i32) -> (i32, i32) {
    %c0_i32 = arith.constant 0 : i32
    %c0_i32_0 = arith.constant 0 : i32
    %c0_i32_1 = arith.constant 0 : i32
    return %c0_i32, %c0_i32_0 : i32, i32
  }
  func.func @transform_3(%arg0: i32) -> (i32, i32) {
    %c0_i32 = arith.constant 0 : i32
    %c0_i32_0 = arith.constant 0 : i32
    %c0_i32_1 = arith.constant 0 : i32
    return %c0_i32, %c0_i32_0 : i32, i32
  }
  func.func @transform_4(%arg0: i32) -> (i32, i32) {
    %c0_i32 = arith.constant 0 : i32
    %c0_i32_0 = arith.constant 0 : i32
    %c0_i32_1 = arith.constant 0 : i32
    return %c0_i32, %c0_i32_0 : i32, i32
  }
  func.func @transform_5(%arg0: i32) -> (i32, i32) {
    %c0_i32 = arith.constant 0 : i32
    %c0_i32_0 = arith.constant 0 : i32
    %c0_i32_1 = arith.constant 0 : i32
    return %c0_i32, %c0_i32_0 : i32, i32
  }
  func.func @transform_6(%arg0: i32) -> (i32, i32) {
    %c0_i32 = arith.constant 0 : i32
    %c0_i32_0 = arith.constant 0 : i32
    %c0_i32_1 = arith.constant 0 : i32
    return %c0_i32, %c0_i32_0 : i32, i32
  }
  func.func @transform_7(%arg0: i32) -> (i32, i32) {
    %c0_i32 = arith.constant 0 : i32
    %c0_i32_0 = arith.constant 0 : i32
    %c0_i32_1 = arith.constant 0 : i32
    return %c0_i32, %c0_i32_0 : i32, i32
  }
  func.func @transform_8(%arg0: i32) -> (i32, i32) {
    %c0_i32 = arith.constant 0 : i32
    %c0_i32_0 = arith.constant 0 : i32
    %c0_i32_1 = arith.constant 0 : i32
    return %c0_i32, %c0_i32_0 : i32, i32
  }
  func.func @transform_9(%arg0: i32) -> (i32, i32) {
    %c0_i32 = arith.constant 0 : i32
    %c0_i32_0 = arith.constant 0 : i32
    %c0_i32_1 = arith.constant 0 : i32
    return %c0_i32, %c0_i32_0 : i32, i32
  }
  func.func @transform_10(%arg0: i32) -> (i32, i32) {
    %c0_i32 = arith.constant 0 : i32
    %c0_i32_0 = arith.constant 0 : i32
    %c0_i32_1 = arith.constant 0 : i32
    return %c0_i32, %c0_i32_0 : i32, i32
  }
  func.func @transform_11(%arg0: i32) -> (i32, i32) {
    %c0_i32 = arith.constant 0 : i32
    %c0_i32_0 = arith.constant 0 : i32
    %c0_i32_1 = arith.constant 0 : i32
    return %c0_i32, %c0_i32_0 : i32, i32
  }
  func.func @transform_12(%arg0: i32) -> (i32, i32) {
    %c0_i32 = arith.constant 0 : i32
    %c0_i32_0 = arith.constant 0 : i32
    %c0_i32_1 = arith.constant 0 : i32
    return %c0_i32, %c0_i32_0 : i32, i32
  }
  func.func @transform_13(%arg0: i32) -> (i32, i32, i32) {
    %c0_i32 = arith.constant 0 : i32
    %c0_i32_0 = arith.constant 0 : i32
    %c0_i32_1 = arith.constant 0 : i32
    return %arg0, %c0_i32, %c0_i32_0 : i32, i32, i32
  }
}

</mosaic_0001>

<llo_original>
// kernel: tpu_custom_call.1
$region0: #{tpu_custom_call.1}
  #allocation0 [shape = 'u32[]', space=smem, size = 0x4, offset = 0x4, fixed_abs, tag = 'smem constant byte address 0x4 - core index']
  #allocation1 [shape = 'u32[144,128]{1,0:T(1,128)}', space=vmem, size = 0x12000, scoped, tag = 'internal scratch']
  %s0 = inlined_call_operand.hbm [shape: f32[32,16,128], index: 0, kind: input, shape index: {}]
  %s1 = inlined_call_operand.vmem [shape: f32[1,128], index: 1, kind: input, shape index: {}]
  %s2 = inlined_call_operand.vmem [shape: f32[1,128], index: 2, kind: input, shape index: {}]
  %s3 = inlined_call_operand.vmem [shape: f32[1,128], index: 3, kind: input, shape index: {}]
  %s4 = inlined_call_operand.hbm [shape: f32[16,128], index: 4, kind: input, shape index: {}]
  %s5 = inlined_call_operand.vmem [shape: bf16[16,16], index: 5, kind: input, shape index: {}]
  %s6 = inlined_call_operand.vmem [shape: f32[1,128], index: 6, kind: input, shape index: {}]
  %s7 = inlined_call_operand.vmem [shape: f32[1,128], index: 7, kind: input, shape index: {}]
  %s8 = inlined_call_operand.vmem [shape: f32[1,128], index: 8, kind: input, shape index: {}]
  %s9 = inlined_call_operand.hbm [shape: bf16[256,128], index: 9, kind: input, shape index: {}]
  %s10 = inlined_call_operand.vmem [shape: f32[1,256], index: 10, kind: input, shape index: {}]
  %s11 = inlined_call_operand.hbm [shape: bf16[128,256], index: 11, kind: input, shape index: {}]
  %s12 = inlined_call_operand.vmem [shape: f32[1,128], index: 12, kind: input, shape index: {}]
  %s13 = inlined_call_operand.hbm [shape: f32[32,16,128], index: 13, kind: output, shape index: {}]
  %s14 = sld [smem:[#allocation0]]
  $region101: #{tpu_custom_call.1} parent=0
    _
  %s16 = ssub.s32 1, %s14
  %s17 = scalar_select 0, %s16, %s14
  $region1: #{tpu_custom_call.1} parent=0
    #allocation2 [shape = 'u8[262144]{0}', space=vmem, size = 0x40000, scoped, tag = 'input window, operand 0']
    #allocation3 [shape = 's32[2]{0}', space=sflag, size = 0x8, scoped, tag = 'scoped memory for tpu_custom_call.1']
    #allocation4 [shape = 's32[2]{0}', space=sflag, size = 0x8, scoped, tag = 'scoped memory for tpu_custom_call.1']
    #allocation5 [shape = 'u8[8192]{0}', space=vmem, size = 0x2000, scoped, tag = 'input window, operand 4, single buffered']
    #allocation6 [shape = 's32[1]{0}', space=sflag, size = 0x4, scoped, tag = 'scoped memory for tpu_custom_call.1']
    #allocation7 [shape = 'u8[65536]{0}', space=vmem, size = 0x10000, scoped, tag = 'input window, operand 9, single buffered']
    #allocation8 [shape = 'u8[65536]{0}', space=vmem, size = 0x10000, scoped, tag = 'input window, operand 11, single buffered']
    #allocation9 [shape = 's32[1]{0}', space=sflag, size = 0x4, scoped, tag = 'scoped memory for tpu_custom_call.1']
    #allocation10 [shape = 'u8[262144]{0}', space=vmem, size = 0x40000, scoped, tag = 'output window, operand 0']
    %18 = vsyncpa [#allocation3], 0
    %s19 = scalar_lea.sflag [#allocation3], 1
    %20 = vsyncpa %s19, 0
    %21 = vsyncpa [#allocation6], 0
    %22 = vsyncpa [#allocation9], 0
    %23 = vsyncpa [#allocation4], 0
    %s24 = scalar_lea.sflag [#allocation4], 1
    %25 = vsyncpa %s24, 0
    loop: start=0, step=1, limit=4
    $region2: #{tpu_custom_call.1} parent=1 // loop_pre_header
      _
    $region3: #{tpu_custom_call.1} parent=1 // loop_header
      %s27 = sphi 0, %s31
      %p28 = scmp.ge.s32.totalorder %s27, 4
      %s37 = sphi 0, %s39
      %s40 = sphi 0, %s37
      %s41 = sphi 0, %s40
      %s57 = sphi 0, %s41
      %s61 = sphi 0, %s61
      %s63 = sphi 0, %s61
      %s64 = sphi 0, %s63
      %s78 = sphi 0, %s64
      %s82 = sphi 0, %s82
      %s84 = sphi 0, %s82
      %s85 = sphi 0, %s84
      %s99 = sphi 0, %s85
      %s103 = sphi 0, %s103
      %s105 = sphi 0, %s103
      %s106 = sphi 0, %s105
      %s120 = sphi 0, %s106
      %s124 = sphi 0, %s124
      %s126 = sphi 0, %s124
      %s127 = sphi 0, %s126
      %s141 = sphi 0, %s127
      %s145 = sphi 0, %s145
      %s147 = sphi 0, %s145
      %s148 = sphi 0, %s147
      %s162 = sphi 0, %s148
      %s166 = sphi 0, %s166
      %s168 = sphi 0, %s166
      %s169 = sphi 0, %s168
      %s183 = sphi 0, %s169
      %s187 = sphi 0, %s187
      %s189 = sphi 0, %s187
      %s190 = sphi 0, %s189
      %s204 = sphi 0, %s190
      %s208 = sphi 0, %s208
      %s210 = sphi 0, %s208
      %s211 = sphi 0, %s210
      %s225 = sphi 0, %s211
      %s229 = sphi 0, %s229
      %s231 = sphi 0, %s229
      %s232 = sphi 0, %s231
      %s246 = sphi 0, %s232
      %s250 = sphi 0, %s250
      %s252 = sphi 0, %s250
      %s253 = sphi 0, %s252
      %s267 = sphi 0, %s253
      %s271 = sphi 0, %s271
      %s273 = sphi 0, %s271
      %s274 = sphi 0, %s273
      %s288 = sphi 0, %s274
      %s292 = sphi 0, %s292
      %s294 = sphi 0, %s292
      %s295 = sphi 0, %s294
      %s309 = sphi 0, %s295
      %s315 = sphi 0, %s317
      %s318 = sphi 0, %s315
      %s319 = sphi 0, %s318
      %s335 = sphi 0, %s319
    $region4: #{tpu_custom_call.1} parent=1 // loop_header_branch
      %30 = sbr.rel (%p28) target = $region8
    $region5: #{tpu_custom_call.1} parent=1 // loop_body
      %s32 = ssub.s32 %s27, 1
      %s33 = ssub.s32 %s27, 2
      %s34 = sadd.s32 %s27, 1
      %s35 = ssub.s32 %s27, %s34
      %p36 = scmp.eq.s32.totalorder %s35, 0
      %s38 = sadd.s32 %s37, 1
      %s39 = scalar_select %p36, %s37, %s38
      %p42 = pneg %p36
      %p43 = scmp.eq.s32.totalorder %s27, 1
      %p44 = por %p42, %p43
      %p45 = scmp.ne.s32.totalorder %s37, %s40
      %p46 = scmp.eq.s32.totalorder %s27, 0
      %p47 = por %p45, %p46
      %p48 = scmp.ne.s32.totalorder %s37, %s40
      %p49 = scmp.eq.s32.totalorder %s32, 1
      %p50 = por %p48, %p49
      %p51 = scmp.ne.s32.totalorder %s40, %s41
      %p52 = scmp.eq.s32.totalorder %s32, 0
      %p53 = por %p51, %p52
      %p54 = scmp.ne.s32.totalorder %s40, %s41
      %p55 = scmp.eq.s32.totalorder %s33, 1
      %p56 = por %p54, %p55
      %p58 = scmp.ne.s32.totalorder %s41, %s57
      %p59 = scmp.eq.s32.totalorder %s33, 0
      %p60 = por %p58, %p59
      %s62 = sadd.s32 %s61, 1
      %p65 = scmp.eq.s32.totalorder %s27, 1
      %p66 = scmp.ne.s32.totalorder %s61, %s63
      %p67 = scmp.eq.s32.totalorder %s27, 0
      %p68 = por %p66, %p67
      %p69 = scmp.ne.s32.totalorder %s61, %s63
      %p70 = scmp.eq.s32.totalorder %s32, 1
      %p71 = por %p69, %p70
      %p72 = scmp.ne.s32.totalorder %s63, %s64
      %p73 = scmp.eq.s32.totalorder %s32, 0
      %p74 = por %p72, %p73
      %p75 = scmp.ne.s32.totalorder %s63, %s64
      %p76 = scmp.eq.s32.totalorder %s33, 1
      %p77 = por %p75, %p76
      %p79 = scmp.ne.s32.totalorder %s64, %s78
      %p80 = scmp.eq.s32.totalorder %s33, 0
      %p81 = por %p79, %p80
      %s83 = sadd.s32 %s82, 1
      %p86 = scmp.eq.s32.totalorder %s27, 1
      %p87 = scmp.ne.s32.totalorder %s82, %s84
      %p88 = scmp.eq.s32.totalorder %s27, 0
      %p89 = por %p87, %p88
      %p90 = scmp.ne.s32.totalorder %s82, %s84
      %p91 = scmp.eq.s32.totalorder %s32, 1
      %p92 = por %p90, %p91
      %p93 = scmp.ne.s32.totalorder %s84, %s85
      %p94 = scmp.eq.s32.totalorder %s32, 0
      %p95 = por %p93, %p94
      %p96 = scmp.ne.s32.totalorder %s84, %s85
      %p97 = scmp.eq.s32.totalorder %s33, 1
      %p98 = por %p96, %p97
      %p100 = scmp.ne.s32.totalorder %s85, %s99
      %p101 = scmp.eq.s32.totalorder %s33, 0
      %p102 = por %p100, %p101
      %s104 = sadd.s32 %s103, 1
      %p107 = scmp.eq.s32.totalorder %s27, 1
      %p108 = scmp.ne.s32.totalorder %s103, %s105
      %p109 = scmp.eq.s32.totalorder %s27, 0
      %p110 = por %p108, %p109
      %p111 = scmp.ne.s32.totalorder %s103, %s105
      %p112 = scmp.eq.s32.totalorder %s32, 1
      %p113 = por %p111, %p112
      %p114 = scmp.ne.s32.totalorder %s105, %s106
      %p115 = scmp.eq.s32.totalorder %s32, 0
      %p116 = por %p114, %p115
      %p117 = scmp.ne.s32.totalorder %s105, %s106
      %p118 = scmp.eq.s32.totalorder %s33, 1
      %p119 = por %p117, %p118
      %p121 = scmp.ne.s32.totalorder %s106, %s120
      %p122 = scmp.eq.s32.totalorder %s33, 0
      %p123 = por %p121, %p122
      %s125 = sadd.s32 %s124, 1
      %p128 = scmp.eq.s32.totalorder %s27, 1
      %p129 = scmp.ne.s32.totalorder %s124, %s126
      %p130 = scmp.eq.s32.totalorder %s27, 0
      %p131 = por %p129, %p130
      %p132 = scmp.ne.s32.totalorder %s124, %s126
      %p133 = scmp.eq.s32.totalorder %s32, 1
      %p134 = por %p132, %p133
      %p135 = scmp.ne.s32.totalorder %s126, %s127
      %p136 = scmp.eq.s32.totalorder %s32, 0
      %p137 = por %p135, %p136
      %p138 = scmp.ne.s32.totalorder %s126, %s127
      %p139 = scmp.eq.s32.totalorder %s33, 1
      %p140 = por %p138, %p139
      %p142 = scmp.ne.s32.totalorder %s127, %s141
      %p143 = scmp.eq.s32.totalorder %s33, 0
      %p144 = por %p142, %p143
      %s146 = sadd.s32 %s145, 1
      %p149 = scmp.eq.s32.totalorder %s27, 1
      %p150 = scmp.ne.s32.totalorder %s145, %s147
      %p151 = scmp.eq.s32.totalorder %s27, 0
      %p152 = por %p150, %p151
      %p153 = scmp.ne.s32.totalorder %s145, %s147
      %p154 = scmp.eq.s32.totalorder %s32, 1
      %p155 = por %p153, %p154
      %p156 = scmp.ne.s32.totalorder %s147, %s148
      %p157 = scmp.eq.s32.totalorder %s32, 0
      %p158 = por %p156, %p157
      %p159 = scmp.ne.s32.totalorder %s147, %s148
      %p160 = scmp.eq.s32.totalorder %s33, 1
      %p161 = por %p159, %p160
      %p163 = scmp.ne.s32.totalorder %s148, %s162
      %p164 = scmp.eq.s32.totalorder %s33, 0
      %p165 = por %p163, %p164
      %s167 = sadd.s32 %s166, 1
      %p170 = scmp.eq.s32.totalorder %s27, 1
      %p171 = scmp.ne.s32.totalorder %s166, %s168
      %p172 = scmp.eq.s32.totalorder %s27, 0
      %p173 = por %p171, %p172
      %p174 = scmp.ne.s32.totalorder %s166, %s168
      %p175 = scmp.eq.s32.totalorder %s32, 1
      %p176 = por %p174, %p175
      %p177 = scmp.ne.s32.totalorder %s168, %s169
      %p178 = scmp.eq.s32.totalorder %s32, 0
      %p179 = por %p177, %p178
      %p180 = scmp.ne.s32.totalorder %s168, %s169
      %p181 = scmp.eq.s32.totalorder %s33, 1
      %p182 = por %p180, %p181
      %p184 = scmp.ne.s32.totalorder %s169, %s183
      %p185 = scmp.eq.s32.totalorder %s33, 0
      %p186 = por %p184, %p185
      %s188 = sadd.s32 %s187, 1
      %p191 = scmp.eq.s32.totalorder %s27, 1
      %p192 = scmp.ne.s32.totalorder %s187, %s189
      %p193 = scmp.eq.s32.totalorder %s27, 0
      %p194 = por %p192, %p193
      %p195 = scmp.ne.s32.totalorder %s187, %s189
      %p196 = scmp.eq.s32.totalorder %s32, 1
      %p197 = por %p195, %p196
      %p198 = scmp.ne.s32.totalorder %s189, %s190
      %p199 = scmp.eq.s32.totalorder %s32, 0
      %p200 = por %p198, %p199
      %p201 = scmp.ne.s32.totalorder %s189, %s190
      %p202 = scmp.eq.s32.totalorder %s33, 1
      %p203 = por %p201, %p202
      %p205 = scmp.ne.s32.totalorder %s190, %s204
      %p206 = scmp.eq.s32.totalorder %s33, 0
      %p207 = por %p205, %p206
      %s209 = sadd.s32 %s208, 1
      %p212 = scmp.eq.s32.totalorder %s27, 1
      %p213 = scmp.ne.s32.totalorder %s208, %s210
      %p214 = scmp.eq.s32.totalorder %s27, 0
      %p215 = por %p213, %p214
      %p216 = scmp.ne.s32.totalorder %s208, %s210
      %p217 = scmp.eq.s32.totalorder %s32, 1
      %p218 = por %p216, %p217
      %p219 = scmp.ne.s32.totalorder %s210, %s211
      %p220 = scmp.eq.s32.totalorder %s32, 0
      %p221 = por %p219, %p220
      %p222 = scmp.ne.s32.totalorder %s210, %s211
      %p223 = scmp.eq.s32.totalorder %s33, 1
      %p224 = por %p222, %p223
      %p226 = scmp.ne.s32.totalorder %s211, %s225
      %p227 = scmp.eq.s32.totalorder %s33, 0
      %p228 = por %p226, %p227
      %s230 = sadd.s32 %s229, 1
      %p233 = scmp.eq.s32.totalorder %s27, 1
      %p234 = scmp.ne.s32.totalorder %s229, %s231
      %p235 = scmp.eq.s32.totalorder %s27, 0
      %p236 = por %p234, %p235
      %p237 = scmp.ne.s32.totalorder %s229, %s231
      %p238 = scmp.eq.s32.totalorder %s32, 1
      %p239 = por %p237, %p238
      %p240 = scmp.ne.s32.totalorder %s231, %s232
      %p241 = scmp.eq.s32.totalorder %s32, 0
      %p242 = por %p240, %p241
      %p243 = scmp.ne.s32.totalorder %s231, %s232
      %p244 = scmp.eq.s32.totalorder %s33, 1
      %p245 = por %p243, %p244
      %p247 = scmp.ne.s32.totalorder %s232, %s246
      %p248 = scmp.eq.s32.totalorder %s33, 0
      %p249 = por %p247, %p248
      %s251 = sadd.s32 %s250, 1
      %p254 = scmp.eq.s32.totalorder %s27, 1
      %p255 = scmp.ne.s32.totalorder %s250, %s252
      %p256 = scmp.eq.s32.totalorder %s27, 0
      %p257 = por %p255, %p256
      %p258 = scmp.ne.s32.totalorder %s250, %s252
      %p259 = scmp.eq.s32.totalorder %s32, 1
      %p260 = por %p258, %p259
      %p261 = scmp.ne.s32.totalorder %s252, %s253
      %p262 = scmp.eq.s32.totalorder %s32, 0
      %p263 = por %p261, %p262
      %p264 = scmp.ne.s32.totalorder %s252, %s253
      %p265 = scmp.eq.s32.totalorder %s33, 1
      %p266 = por %p264, %p265
      %p268 = scmp.ne.s32.totalorder %s253, %s267
      %p269 = scmp.eq.s32.totalorder %s33, 0
      %p270 = por %p268, %p269
      %s272 = sadd.s32 %s271, 1
      %p275 = scmp.eq.s32.totalorder %s27, 1
      %p276 = scmp.ne.s32.totalorder %s271, %s273
      %p277 = scmp.eq.s32.totalorder %s27, 0
      %p278 = por %p276, %p277
      %p279 = scmp.ne.s32.totalorder %s271, %s273
      %p280 = scmp.eq.s32.totalorder %s32, 1
      %p281 = por %p279, %p280
      %p282 = scmp.ne.s32.totalorder %s273, %s274
      %p283 = scmp.eq.s32.totalorder %s32, 0
      %p284 = por %p282, %p283
      %p285 = scmp.ne.s32.totalorder %s273, %s274
      %p286 = scmp.eq.s32.totalorder %s33, 1
      %p287 = por %p285, %p286
      %p289 = scmp.ne.s32.totalorder %s274, %s288
      %p290 = scmp.eq.s32.totalorder %s33, 0
      %p291 = por %p289, %p290
      %s293 = sadd.s32 %s292, 1
      %p296 = scmp.eq.s32.totalorder %s27, 1
      %p297 = scmp.ne.s32.totalorder %s292, %s294
      %p298 = scmp.eq.s32.totalorder %s27, 0
      %p299 = por %p297, %p298
      %p300 = scmp.ne.s32.totalorder %s292, %s294
      %p301 = scmp.eq.s32.totalorder %s32, 1
      %p302 = por %p300, %p301
      %p303 = scmp.ne.s32.totalorder %s294, %s295
      %p304 = scmp.eq.s32.totalorder %s32, 0
      %p305 = por %p303, %p304
      %p306 = scmp.ne.s32.totalorder %s294, %s295
      %p307 = scmp.eq.s32.totalorder %s33, 1
      %p308 = por %p306, %p307
      %p310 = scmp.ne.s32.totalorder %s295, %s309
      %p311 = scmp.eq.s32.totalorder %s33, 0
      %p312 = por %p310, %p311
      %s313 = ssub.s32 %s27, %s34
      %p314 = scmp.eq.s32.totalorder %s313, 0
      %s316 = sadd.s32 %s315, 1
      %s317 = scalar_select %p314, %s315, %s316
      %p320 = pneg %p314
      %p321 = scmp.eq.s32.totalorder %s27, 1
      %p322 = por %p320, %p321
      %p323 = scmp.ne.s32.totalorder %s315, %s318
      %p324 = scmp.eq.s32.totalorder %s27, 0
      %p325 = por %p323, %p324
      %p326 = scmp.ne.s32.totalorder %s315, %s318
      %p327 = scmp.eq.s32.totalorder %s32, 1
      %p328 = por %p326, %p327
      %p329 = scmp.ne.s32.totalorder %s318, %s319
      %p330 = scmp.eq.s32.totalorder %s32, 0
      %p331 = por %p329, %p330
      %p332 = scmp.ne.s32.totalorder %s318, %s319
      %p333 = scmp.eq.s32.totalorder %s33, 1
      %p334 = por %p332, %p333
      %p336 = scmp.ne.s32.totalorder %s319, %s335
      %p337 = scmp.eq.s32.totalorder %s33, 0
      %p338 = por %p336, %p337
      %p339 = scmp.le.s32.totalorder 1, %s27
      %p340 = scmp.lt.s32.totalorder %s27, 3
      %p341 = pnand %p339, %p340
      %p342 = pneg %p341
      // Predicated region
      $region9: #{tpu_custom_call.1} parent=5 // pred_check
        _
      $region10: #{tpu_custom_call.1} parent=5 // pred_check_branch
        %344 = sbr.rel (%p341) target = $region12
      $region11: #{tpu_custom_call.1} parent=5 // pred_region
        %s345 = ssub.s32 %s27, 1
        // Predicated region
        $region13: #{tpu_custom_call.1} parent=11 // pred_check
          %p346 = pneg %p74
        $region14: #{tpu_custom_call.1} parent=11 // pred_check_branch
          %348 = sbr.rel (%p346) target = $region16
        $region15: #{tpu_custom_call.1} parent=11 // pred_region
          _
        $region16: #{tpu_custom_call.1} parent=11 // pred_fallthru
          _
        // Predicated region
        $region17: #{tpu_custom_call.1} parent=11 // pred_check
          %p349 = pneg %p95
        $region18: #{tpu_custom_call.1} parent=11 // pred_check_branch
          %351 = sbr.rel (%p349) target = $region20
        $region19: #{tpu_custom_call.1} parent=11 // pred_region
          _
        $region20: #{tpu_custom_call.1} parent=11 // pred_fallthru
          _
        // Predicated region
        $region21: #{tpu_custom_call.1} parent=11 // pred_check
          %p352 = pneg %p116
        $region22: #{tpu_custom_call.1} parent=11 // pred_check_branch
          %354 = sbr.rel (%p352) target = $region24
        $region23: #{tpu_custom_call.1} parent=11 // pred_region
          _
        $region24: #{tpu_custom_call.1} parent=11 // pred_fallthru
          _
        // Predicated region
        $region25: #{tpu_custom_call.1} parent=11 // pred_check
          %p355 = pneg %p137
        $region26: #{tpu_custom_call.1} parent=11 // pred_check_branch
          %357 = sbr.rel (%p355) target = $region28
        $region27: #{tpu_custom_call.1} parent=11 // pred_region
          %s359 = ssub.s32 256, 256
          %360 = vsyncadd [#allocation6], %s359
          %s361 = sshll.u32 [#allocation5], 4
          %s362 = int_to_ptr.vmem [resolvable:$true] %s361
          %367 = dma.hbm_to_vmem [thread:$0]  %s4, 256, %s362, [#allocation6], 128, 128, 8
        $region28: #{tpu_custom_call.1} parent=11 // pred_fallthru
          _
        // Predicated region
        $region29: #{tpu_custom_call.1} parent=11 // pred_check
          %p368 = pneg %p158
        $region30: #{tpu_custom_call.1} parent=11 // pred_check_branch
          %370 = sbr.rel (%p368) target = $region32
        $region31: #{tpu_custom_call.1} parent=11 // pred_region
          _
        $region32: #{tpu_custom_call.1} parent=11 // pred_fallthru
          _
        // Predicated region
        $region33: #{tpu_custom_call.1} parent=11 // pred_check
          %p371 = pneg %p179
        $region34: #{tpu_custom_call.1} parent=11 // pred_check_branch
          %373 = sbr.rel (%p371) target = $region36
        $region35: #{tpu_custom_call.1} parent=11 // pred_region
          _
        $region36: #{tpu_custom_call.1} parent=11 // pred_fallthru
          _
        // Predicated region
        $region37: #{tpu_custom_call.1} parent=11 // pred_check
          %p374 = pneg %p200
        $region38: #{tpu_custom_call.1} parent=11 // pred_check_branch
          %376 = sbr.rel (%p374) target = $region40
        $region39: #{tpu_custom_call.1} parent=11 // pred_region
          _
        $region40: #{tpu_custom_call.1} parent=11 // pred_fallthru
          _
        // Predicated region
        $region41: #{tpu_custom_call.1} parent=11 // pred_check
          %p377 = pneg %p221
        $region42: #{tpu_custom_call.1} parent=11 // pred_check_branch
          %379 = sbr.rel (%p377) target = $region44
        $region43: #{tpu_custom_call.1} parent=11 // pred_region
          _
        $region44: #{tpu_custom_call.1} parent=11 // pred_fallthru
          _
        // Predicated region
        $region45: #{tpu_custom_call.1} parent=11 // pred_check
          %p380 = pneg %p242
        $region46: #{tpu_custom_call.1} parent=11 // pred_check_branch
          %382 = sbr.rel (%p380) target = $region48
        $region47: #{tpu_custom_call.1} parent=11 // pred_region
          %s384 = ssub.s32 2048, 2048
          %385 = vsyncadd [#allocation6], %s384
          %s386 = sshll.u32 [#allocation7], 4
          %s387 = int_to_ptr.vmem [resolvable:$true] %s386
          %392 = dma.hbm_to_vmem [thread:$0]  %s9, 2048, %s387, [#allocation6], 64, 64, 4
        $region48: #{tpu_custom_call.1} parent=11 // pred_fallthru
          _
        // Predicated region
        $region49: #{tpu_custom_call.1} parent=11 // pred_check
          %p393 = pneg %p263
        $region50: #{tpu_custom_call.1} parent=11 // pred_check_branch
          %395 = sbr.rel (%p393) target = $region52
        $region51: #{tpu_custom_call.1} parent=11 // pred_region
          _
        $region52: #{tpu_custom_call.1} parent=11 // pred_fallthru
          _
        // Predicated region
        $region53: #{tpu_custom_call.1} parent=11 // pred_check
          %p396 = pneg %p284
        $region54: #{tpu_custom_call.1} parent=11 // pred_check_branch
          %398 = sbr.rel (%p396) target = $region56
        $region55: #{tpu_custom_call.1} parent=11 // pred_region
          %s400 = ssub.s32 2048, 2048
          %401 = vsyncadd [#allocation9], %s400
          %s402 = sshll.u32 [#allocation8], 4
          %s403 = int_to_ptr.vmem [resolvable:$true] %s402
          %408 = dma.hbm_to_vmem [thread:$0]  %s11, 2048, %s403, [#allocation9], 128, 128, 8
        $region56: #{tpu_custom_call.1} parent=11 // pred_fallthru
          _
        // Predicated region
        $region57: #{tpu_custom_call.1} parent=11 // pred_check
          %p409 = pneg %p305
        $region58: #{tpu_custom_call.1} parent=11 // pred_check_branch
          %411 = sbr.rel (%p409) target = $region60
        $region59: #{tpu_custom_call.1} parent=11 // pred_region
          _
        $region60: #{tpu_custom_call.1} parent=11 // pred_fallthru
          _
      $region12: #{tpu_custom_call.1} parent=5 // pred_fallthru
        _
      %p412 = scmp.lt.s32.totalorder %s27, 2
      // Predicated region
      $region61: #{tpu_custom_call.1} parent=5 // pred_check
        %p413 = pneg %p412
      $region62: #{tpu_custom_call.1} parent=5 // pred_check_branch
        %415 = sbr.rel (%p413) target = $region64
      $region63: #{tpu_custom_call.1} parent=5 // pred_region
        // Predicated region
        $region65: #{tpu_custom_call.1} parent=63 // pred_check
          %p416 = pneg %p47
        $region66: #{tpu_custom_call.1} parent=63 // pred_check_branch
          %418 = sbr.rel (%p416) target = $region68
        $region67: #{tpu_custom_call.1} parent=63 // pred_region
          %s419 = sand.u32 %s37, 1
          %s420 = scalar_lea.sflag [#allocation3], %s419
          %s421 = sand.u32 %s37, 1
          %s422 = smul.addr %s421, 256
          %s423 = scalar_lea.vmem [#allocation2], %s422
          %s424 = smul.u32 16, %s27
          %s426 = ssub.s32 4096, 4096
          %427 = vsyncadd %s420, %s426
          %s428 = smul.addr %s424, 2
          %s429 = smul.addr %s428, 128
          %s430 = scalar_lea.hbm %s0, %s429
          %s431 = sshll.u32 %s423, 4
          %s432 = int_to_ptr.vmem [resolvable:$true] %s431
          %437 = dma.hbm_to_vmem [thread:$0]  %s430, 4096, %s432, %s420, 128, 128, 8
        $region68: #{tpu_custom_call.1} parent=63 // pred_fallthru
          _
      $region64: #{tpu_custom_call.1} parent=5 // pred_fallthru
        _
      %p438 = scmp.le.s32.totalorder 1, %s27
      %p439 = scmp.lt.s32.totalorder %s27, 3
      %p440 = pnand %p438, %p439
      %p441 = pneg %p440
      // Predicated region
      $region69: #{tpu_custom_call.1} parent=5 // pred_check
        _
      $region70: #{tpu_custom_call.1} parent=5 // pred_check_branch
        %443 = sbr.rel (%p440) target = $region72
      $region71: #{tpu_custom_call.1} parent=5 // pred_region
        %s444 = ssub.s32 %s27, 1
        %s445 = sand.u32 %s40, 1
        %s446 = scalar_lea.sflag [#allocation3], %s445
        %s447 = sand.u32 %s40, 1
        %s448 = smul.addr %s447, 256
        %s449 = scalar_lea.vmem [#allocation2], %s448
        // Predicated region
        $region73: #{tpu_custom_call.1} parent=71 // pred_check
          %p450 = pneg %p53
        $region74: #{tpu_custom_call.1} parent=71 // pred_check_branch
          %452 = sbr.rel (%p450) target = $region76
        $region75: #{tpu_custom_call.1} parent=71 // pred_region
          %453 = dma.done %s446, 4096
        $region76: #{tpu_custom_call.1} parent=71 // pred_fallthru
          _
        // Predicated region
        $region77: #{tpu_custom_call.1} parent=71 // pred_check
          %p454 = pneg %p137
        $region78: #{tpu_custom_call.1} parent=71 // pred_check_branch
          %456 = sbr.rel (%p454) target = $region80
        $region79: #{tpu_custom_call.1} parent=71 // pred_region
          %457 = dma.done [#allocation6], 256
        $region80: #{tpu_custom_call.1} parent=71 // pred_fallthru
          _
        // Predicated region
        $region81: #{tpu_custom_call.1} parent=71 // pred_check
          %p458 = pneg %p242
        $region82: #{tpu_custom_call.1} parent=71 // pred_check_branch
          %460 = sbr.rel (%p458) target = $region84
        $region83: #{tpu_custom_call.1} parent=71 // pred_region
          %461 = dma.done [#allocation6], 2048
        $region84: #{tpu_custom_call.1} parent=71 // pred_fallthru
          _
        // Predicated region
        $region85: #{tpu_custom_call.1} parent=71 // pred_check
          %p462 = pneg %p284
        $region86: #{tpu_custom_call.1} parent=71 // pred_check_branch
          %464 = sbr.rel (%p462) target = $region88
        $region87: #{tpu_custom_call.1} parent=71 // pred_region
          %465 = dma.done [#allocation9], 2048
        $region88: #{tpu_custom_call.1} parent=71 // pred_fallthru
          _
        %s466 = sand.u32 %s40, 1
        %s467 = scalar_lea.sflag [#allocation3], %s466
        %s468 = sand.u32 %s40, 1
        %s469 = smul.addr %s468, 256
        %s470 = scalar_lea.vmem [#allocation2], %s469
        %p471 = pneg %p53
        %p472 = pneg %p50
        %p473 = pneg %p74
        %p474 = pneg %p71
        %p475 = pneg %p95
        %p476 = pneg %p92
        %p477 = pneg %p116
        %p478 = pneg %p113
        %p479 = pneg %p137
        %p480 = pneg %p134
        %p481 = pneg %p158
        %p482 = pneg %p155
        %p483 = pneg %p179
        %p484 = pneg %p176
        %p485 = pneg %p200
        %p486 = pneg %p197
        %p487 = pneg %p221
        %p488 = pneg %p218
        %p489 = pneg %p242
        %p490 = pneg %p239
        %p491 = pneg %p263
        %p492 = pneg %p260
        %p493 = pneg %p284
        %p494 = pneg %p281
        %p495 = pneg %p305
        %p496 = pneg %p302
        %p497 = pneg %p331
        %p498 = pneg %p328
        %s499 = sand.u32 %s318, 1
        %s500 = scalar_lea.sflag [#allocation4], %s499
        %s501 = sand.u32 %s318, 1
        %s502 = smul.addr %s501, 256
        %s503 = scalar_lea.vmem [#allocation10], %s502
        %s504 = smul.u32 16, %s32
        %s505 = smul.u32 16, %s32
        %v507 = vld [vmem:[%s449] sm:$0xff]
        %v508 = vld [vmem:[%s449 + $0x8] sm:$0xff]
        %v509 = vld [vmem:[%s449 + $0x10] sm:$0xff]
        %v510 = vld [vmem:[%s449 + $0x18] sm:$0xff]
        %v511 = vld [vmem:[%s449 + $0x20] sm:$0xff]
        %v512 = vld [vmem:[%s449 + $0x28] sm:$0xff]
        %v513 = vld [vmem:[%s449 + $0x30] sm:$0xff]
        %v514 = vld [vmem:[%s449 + $0x38] sm:$0xff]
        %v515 = vld [vmem:[%s449 + $0x40] sm:$0xff]
        %v516 = vld [vmem:[%s449 + $0x48] sm:$0xff]
        %v517 = vld [vmem:[%s449 + $0x50] sm:$0xff]
        %v518 = vld [vmem:[%s449 + $0x58] sm:$0xff]
        %v519 = vld [vmem:[%s449 + $0x60] sm:$0xff]
        %v520 = vld [vmem:[%s449 + $0x68] sm:$0xff]
        %v521 = vld [vmem:[%s449 + $0x70] sm:$0xff]
        %v522 = vld [vmem:[%s449 + $0x78] sm:$0xff]
        %v523 = vld [vmem:[%s449 + $0x80] sm:$0xff]
        %v524 = vld [vmem:[%s449 + $0x88] sm:$0xff]
        %v525 = vld [vmem:[%s449 + $0x90] sm:$0xff]
        %v526 = vld [vmem:[%s449 + $0x98] sm:$0xff]
        %v527 = vld [vmem:[%s449 + $0xa0] sm:$0xff]
        %v528 = vld [vmem:[%s449 + $0xa8] sm:$0xff]
        %v529 = vld [vmem:[%s449 + $0xb0] sm:$0xff]
        %v530 = vld [vmem:[%s449 + $0xb8] sm:$0xff]
        %v531 = vld [vmem:[%s449 + $0xc0] sm:$0xff]
        %v532 = vld [vmem:[%s449 + $0xc8] sm:$0xff]
        %v533 = vld [vmem:[%s449 + $0xd0] sm:$0xff]
        %v534 = vld [vmem:[%s449 + $0xd8] sm:$0xff]
        %v535 = vld [vmem:[%s449 + $0xe0] sm:$0xff]
        %v536 = vld [vmem:[%s449 + $0xe8] sm:$0xff]
        %v537 = vld [vmem:[%s449 + $0xf0] sm:$0xff]
        %v538 = vld [vmem:[%s449 + $0xf8] sm:$0xff]
        %v539 = vld [vmem:[%s1] sm:$0x1]
        %v541 = vlaneseq
        %v542 = vshrl.u32 %v541, 7
        %v543 = vsub.s32 0, %v542
        %v544 = vrot.slane %v539, %v543
        %v546 = vmul.f32 %v507, %v544
        %v547 = vmul.f32 %v508, %v544
        %v548 = vmul.f32 %v509, %v544
        %v549 = vmul.f32 %v510, %v544
        %v550 = vmul.f32 %v511, %v544
        %v551 = vmul.f32 %v512, %v544
        %v552 = vmul.f32 %v513, %v544
        %v553 = vmul.f32 %v514, %v544
        %v554 = vmul.f32 %v515, %v544
        %v555 = vmul.f32 %v516, %v544
        %v556 = vmul.f32 %v517, %v544
        %v557 = vmul.f32 %v518, %v544
        %v558 = vmul.f32 %v519, %v544
        %v559 = vmul.f32 %v520, %v544
        %v560 = vmul.f32 %v521, %v544
        %v561 = vmul.f32 %v522, %v544
        %v562 = vmul.f32 %v523, %v544
        %v563 = vmul.f32 %v524, %v544
        %v564 = vmul.f32 %v525, %v544
        %v565 = vmul.f32 %v526, %v544
        %v566 = vmul.f32 %v527, %v544
        %v567 = vmul.f32 %v528, %v544
        %v568 = vmul.f32 %v529, %v544
        %v569 = vmul.f32 %v530, %v544
        %v570 = vmul.f32 %v531, %v544
        %v571 = vmul.f32 %v532, %v544
        %v572 = vmul.f32 %v533, %v544
        %v573 = vmul.f32 %v534, %v544
        %v574 = vmul.f32 %v535, %v544
        %v575 = vmul.f32 %v536, %v544
        %v576 = vmul.f32 %v537, %v544
        %v577 = vmul.f32 %v538, %v544
        %v578 = vld [vmem:[%s2] sm:$0x1]
        %v580 = vlaneseq
        %v581 = vshrl.u32 %v580, 7
        %v582 = vsub.s32 0, %v581
        %v583 = vrot.slane %v578, %v582
        %v585 = vadd.f32 %v546, %v583
        %v586 = vadd.f32 %v547, %v583
        %v587 = vadd.f32 %v548, %v583
        %v588 = vadd.f32 %v549, %v583
        %v589 = vadd.f32 %v550, %v583
        %v590 = vadd.f32 %v551, %v583
        %v591 = vadd.f32 %v552, %v583
        %v592 = vadd.f32 %v553, %v583
        %v593 = vadd.f32 %v554, %v583
        %v594 = vadd.f32 %v555, %v583
        %v595 = vadd.f32 %v556, %v583
        %v596 = vadd.f32 %v557, %v583
        %v597 = vadd.f32 %v558, %v583
        %v598 = vadd.f32 %v559, %v583
        %v599 = vadd.f32 %v560, %v583
        %v600 = vadd.f32 %v561, %v583
        %v601 = vadd.f32 %v562, %v583
        %v602 = vadd.f32 %v563, %v583
        %v603 = vadd.f32 %v564, %v583
        %v604 = vadd.f32 %v565, %v583
        %v605 = vadd.f32 %v566, %v583
        %v606 = vadd.f32 %v567, %v583
        %v607 = vadd.f32 %v568, %v583
        %v608 = vadd.f32 %v569, %v583
        %v609 = vadd.f32 %v570, %v583
        %v610 = vadd.f32 %v571, %v583
        %v611 = vadd.f32 %v572, %v583
        %v612 = vadd.f32 %v573, %v583
        %v613 = vadd.f32 %v574, %v583
        %v614 = vadd.f32 %v575, %v583
        %v615 = vadd.f32 %v576, %v583
        %v616 = vadd.f32 %v577, %v583
        %v617 = vld [vmem:[%s5] sm:$0xf]
        %v618 = vld [vmem:[%s5 + $0x4] sm:$0xf]
        %v619 = vpack.c.bf16 %v586, %v585
        %v620 = vpack.c.bf16 %v588, %v587
        %v621 = vpack.c.bf16 %v590, %v589
        %v622 = vpack.c.bf16 %v592, %v591
        %v623 = vpack.c.bf16 %v594, %v593
        %v624 = vpack.c.bf16 %v596, %v595
        %v625 = vpack.c.bf16 %v598, %v597
        %v626 = vpack.c.bf16 %v600, %v599
        %v627 = vpack.c.bf16 %v602, %v601
        %v628 = vpack.c.bf16 %v604, %v603
        %v629 = vpack.c.bf16 %v606, %v605
        %v630 = vpack.c.bf16 %v608, %v607
        %v631 = vpack.c.bf16 %v610, %v609
        %v632 = vpack.c.bf16 %v612, %v611
        %v633 = vpack.c.bf16 %v614, %v613
        %v634 = vpack.c.bf16 %v616, %v615
        %v637 = vunpack.c.l.b16 %v617
        %v638 = vunpack.c.l.b16 %v618
        %v639 = vpack.c.b16 %v638, %v637
        %vm640 = vcmask 130048
        %v642 = vsel %vm640, %v639, 0
        %644 = vmatprep.subr.bf16.mxu0 0
        %645 = vmatpush1.bf16.msra.mxu0 %v619
        %646 = vmatprep.subr.bf16.mxu0 0
        %647 = vmatpush1.bf16.msra.mxu0 0
        %648 = vmatprep.subr.bf16.mxu0 0
        %649 = vmatpush1.bf16.msra.mxu0 0
        %650 = vmatprep.subr.bf16.mxu0 0
        %651 = vmatpush1.bf16.msra.mxu0 0
        %652 = vmatprep.subr.bf16.mxu0 0
        %653 = vmatpush1.bf16.msra.mxu0 0
        %654 = vmatprep.subr.bf16.mxu0 0
        %655 = vmatpush1.bf16.msra.mxu0 0
        %656 = vmatprep.subr.bf16.mxu0 0
        %657 = vmatpush1.bf16.msra.mxu0 0
        %658 = vmatprep.subr.bf16.mxu0 0
        %659 = vmatpush1.bf16.msra.mxu0 0
        %660 = vmatprep.subr.bf16.mxu0 0
        %661 = vmatpush1.bf16.msra.mxu0 0
        %662 = vmatprep.subr.bf16.mxu0 0
        %663 = vmatpush1.bf16.msra.mxu0 0
        %664 = vmatprep.subr.bf16.mxu0 0
        %665 = vmatpush1.bf16.msra.mxu0 0
        %666 = vmatprep.subr.bf16.mxu0 0
        %667 = vmatpush1.bf16.msra.mxu0 0
        %668 = vmatprep.subr.bf16.mxu0 0
        %669 = vmatpush1.bf16.msra.mxu0 0
        %670 = vmatprep.subr.bf16.mxu0 0
        %671 = vmatpush1.bf16.msra.mxu0 0
        %672 = vmatprep.subr.bf16.mxu0 0
        %673 = vmatpush1.bf16.msra.mxu0 0
        %674 = vmatprep.subr.bf16.mxu0 0
        %675 = vmatpush1.bf16.msra.mxu0 0
        %676 = vmatprep.mubr.bf16.mxu0 0
        %677 = vmatmul.mubr.bf16.gmra.mrb[0].mxu0 %v642
        %v678 = vpop.f32.mrb[0].mxu0
        %v679 = vadd.f32 0.0, %v678
        %v680 = vpop.f32.mrb[0].mxu0
        %v681 = vpop.f32.mrb[0].mxu0
        %v682 = vadd.f32 0.0, %v681
        %v683 = vpop.f32.mrb[0].mxu0
        %684 = vdwg.mxu0
        %685 = vmatprep.subr.bf16.mxu0 0
        %686 = vmatpush1.bf16.msra.mxu0 %v620
        %687 = vmatprep.subr.bf16.mxu0 0
        %688 = vmatpush1.bf16.msra.mxu0 0
        %689 = vmatprep.subr.bf16.mxu0 0
        %690 = vmatpush1.bf16.msra.mxu0 0
        %691 = vmatprep.subr.bf16.mxu0 0
        %692 = vmatpush1.bf16.msra.mxu0 0
        %693 = vmatprep.subr.bf16.mxu0 0
        %694 = vmatpush1.bf16.msra.mxu0 0
        %695 = vmatprep.subr.bf16.mxu0 0
        %696 = vmatpush1.bf16.msra.mxu0 0
        %697 = vmatprep.subr.bf16.mxu0 0
        %698 = vmatpush1.bf16.msra.mxu0 0
        %699 = vmatprep.subr.bf16.mxu0 0
        %700 = vmatpush1.bf16.msra.mxu0 0
        %701 = vmatprep.subr.bf16.mxu0 0
        %702 = vmatpush1.bf16.msra.mxu0 0
        %703 = vmatprep.subr.bf16.mxu0 0
        %704 = vmatpush1.bf16.msra.mxu0 0
        %705 = vmatprep.subr.bf16.mxu0 0
        %706 = vmatpush1.bf16.msra.mxu0 0
        %707 = vmatprep.subr.bf16.mxu0 0
        %708 = vmatpush1.bf16.msra.mxu0 0
        %709 = vmatprep.subr.bf16.mxu0 0
        %710 = vmatpush1.bf16.msra.mxu0 0
        %711 = vmatprep.subr.bf16.mxu0 0
        %712 = vmatpush1.bf16.msra.mxu0 0
        %713 = vmatprep.subr.bf16.mxu0 0
        %714 = vmatpush1.bf16.msra.mxu0 0
        %715 = vmatprep.subr.bf16.mxu0 0
        %716 = vmatpush1.bf16.msra.mxu0 0
        %717 = vmatprep.mubr.bf16.mxu0 0
        %718 = vmatmul.mubr.bf16.gmra.mrb[0].mxu0 %v642
        %v719 = vpop.f32.mrb[0].mxu0
        %v720 = vadd.f32 0.0, %v719
        %v721 = vpop.f32.mrb[0].mxu0
        %v722 = vpop.f32.mrb[0].mxu0
        %v723 = vadd.f32 0.0, %v722
        %v724 = vpop.f32.mrb[0].mxu0
        %725 = vdwg.mxu0
        %726 = vmatprep.subr.bf16.mxu0 0
        %727 = vmatpush1.bf16.msra.mxu0 %v621
        %728 = vmatprep.subr.bf16.mxu0 0
        %729 = vmatpush1.bf16.msra.mxu0 0
        %730 = vmatprep.subr.bf16.mxu0 0
        %731 = vmatpush1.bf16.msra.mxu0 0
        %732 = vmatprep.subr.bf16.mxu0 0
        %733 = vmatpush1.bf16.msra.mxu0 0
        %734 = vmatprep.subr.bf16.mxu0 0
        %735 = vmatpush1.bf16.msra.mxu0 0
        %736 = vmatprep.subr.bf16.mxu0 0
        %737 = vmatpush1.bf16.msra.mxu0 0
        %738 = vmatprep.subr.bf16.mxu0 0
        %739 = vmatpush1.bf16.msra.mxu0 0
        %740 = vmatprep.subr.bf16.mxu0 0
        %741 = vmatpush1.bf16.msra.mxu0 0
        %742 = vmatprep.subr.bf16.mxu0 0
        %743 = vmatpush1.bf16.msra.mxu0 0
        %744 = vmatprep.subr.bf16.mxu0 0
        %745 = vmatpush1.bf16.msra.mxu0 0
        %746 = vmatprep.subr.bf16.mxu0 0
        %747 = vmatpush1.bf16.msra.mxu0 0
        %748 = vmatprep.subr.bf16.mxu0 0
        %749 = vmatpush1.bf16.msra.mxu0 0
        %750 = vmatprep.subr.bf16.mxu0 0
        %751 = vmatpush1.bf16.msra.mxu0 0
        %752 = vmatprep.subr.bf16.mxu0 0
        %753 = vmatpush1.bf16.msra.mxu0 0
        %754 = vmatprep.subr.bf16.mxu0 0
        %755 = vmatpush1.bf16.msra.mxu0 0
        %756 = vmatprep.subr.bf16.mxu0 0
        %757 = vmatpush1.bf16.msra.mxu0 0
        %758 = vmatprep.mubr.bf16.mxu0 0
        %759 = vmatmul.mubr.bf16.gmra.mrb[0].mxu0 %v642
        %v760 = vpop.f32.mrb[0].mxu0
        %v761 = vadd.f32 0.0, %v760
        %v762 = vpop.f32.mrb[0].mxu0
        %v763 = vpop.f32.mrb[0].mxu0
        %v764 = vadd.f32 0.0, %v763
        %v765 = vpop.f32.mrb[0].mxu0
        %766 = vdwg.mxu0
        %767 = vmatprep.subr.bf16.mxu0 0
        %768 = vmatpush1.bf16.msra.mxu0 %v622
        %769 = vmatprep.subr.bf16.mxu0 0
        %770 = vmatpush1.bf16.msra.mxu0 0
        %771 = vmatprep.subr.bf16.mxu0 0
        %772 = vmatpush1.bf16.msra.mxu0 0
        %773 = vmatprep.subr.bf16.mxu0 0
        %774 = vmatpush1.bf16.msra.mxu0 0
        %775 = vmatprep.subr.bf16.mxu0 0
        %776 = vmatpush1.bf16.msra.mxu0 0
        %777 = vmatprep.subr.bf16.mxu0 0
        %778 = vmatpush1.bf16.msra.mxu0 0
        %779 = vmatprep.subr.bf16.mxu0 0
        %780 = vmatpush1.bf16.msra.mxu0 0
        %781 = vmatprep.subr.bf16.mxu0 0
        %782 = vmatpush1.bf16.msra.mxu0 0
        %783 = vmatprep.subr.bf16.mxu0 0
        %784 = vmatpush1.bf16.msra.mxu0 0
        %785 = vmatprep.subr.bf16.mxu0 0
        %786 = vmatpush1.bf16.msra.mxu0 0
        %787 = vmatprep.subr.bf16.mxu0 0
        %788 = vmatpush1.bf16.msra.mxu0 0
        %789 = vmatprep.subr.bf16.mxu0 0
        %790 = vmatpush1.bf16.msra.mxu0 0
        %791 = vmatprep.subr.bf16.mxu0 0
        %792 = vmatpush1.bf16.msra.mxu0 0
        %793 = vmatprep.subr.bf16.mxu0 0
        %794 = vmatpush1.bf16.msra.mxu0 0
        %795 = vmatprep.subr.bf16.mxu0 0
        %796 = vmatpush1.bf16.msra.mxu0 0
        %797 = vmatprep.subr.bf16.mxu0 0
        %798 = vmatpush1.bf16.msra.mxu0 0
        %799 = vmatprep.mubr.bf16.mxu0 0
        %800 = vmatmul.mubr.bf16.gmra.mrb[0].mxu0 %v642
        %v801 = vpop.f32.mrb[0].mxu0
        %v802 = vadd.f32 0.0, %v801
        %v803 = vpop.f32.mrb[0].mxu0
        %v804 = vpop.f32.mrb[0].mxu0
        %v805 = vadd.f32 0.0, %v804
        %v806 = vpop.f32.mrb[0].mxu0
        %807 = vdwg.mxu0
        %808 = vmatprep.subr.bf16.mxu0 0
        %809 = vmatpush1.bf16.msra.mxu0 %v623
        %810 = vmatprep.subr.bf16.mxu0 0
        %811 = vmatpush1.bf16.msra.mxu0 0
        %812 = vmatprep.subr.bf16.mxu0 0
        %813 = vmatpush1.bf16.msra.mxu0 0
        %814 = vmatprep.subr.bf16.mxu0 0
        %815 = vmatpush1.bf16.msra.mxu0 0
        %816 = vmatprep.subr.bf16.mxu0 0
        %817 = vmatpush1.bf16.msra.mxu0 0
        %818 = vmatprep.subr.bf16.mxu0 0
        %819 = vmatpush1.bf16.msra.mxu0 0
        %820 = vmatprep.subr.bf16.mxu0 0
        %821 = vmatpush1.bf16.msra.mxu0 0
        %822 = vmatprep.subr.bf16.mxu0 0
        %823 = vmatpush1.bf16.msra.mxu0 0
        %824 = vmatprep.subr.bf16.mxu0 0
        %825 = vmatpush1.bf16.msra.mxu0 0
        %826 = vmatprep.subr.bf16.mxu0 0
        %827 = vmatpush1.bf16.msra.mxu0 0
        %828 = vmatprep.subr.bf16.mxu0 0
        %829 = vmatpush1.bf16.msra.mxu0 0
        %830 = vmatprep.subr.bf16.mxu0 0
        %831 = vmatpush1.bf16.msra.mxu0 0
        %832 = vmatprep.subr.bf16.mxu0 0
        %833 = vmatpush1.bf16.msra.mxu0 0
        %834 = vmatprep.subr.bf16.mxu0 0
        %835 = vmatpush1.bf16.msra.mxu0 0
        %836 = vmatprep.subr.bf16.mxu0 0
        %837 = vmatpush1.bf16.msra.mxu0 0
        %838 = vmatprep.subr.bf16.mxu0 0
        %839 = vmatpush1.bf16.msra.mxu0 0
        %840 = vmatprep.mubr.bf16.mxu0 0
        %841 = vmatmul.mubr.bf16.gmra.mrb[0].mxu0 %v642
        %v842 = vpop.f32.mrb[0].mxu0
        %v843 = vadd.f32 0.0, %v842
        %v844 = vpop.f32.mrb[0].mxu0
        %v845 = vpop.f32.mrb[0].mxu0
        %v846 = vadd.f32 0.0, %v845
        %v847 = vpop.f32.mrb[0].mxu0
        %848 = vdwg.mxu0
        %849 = vmatprep.subr.bf16.mxu0 0
        %850 = vmatpush1.bf16.msra.mxu0 %v624
        %851 = vmatprep.subr.bf16.mxu0 0
        %852 = vmatpush1.bf16.msra.mxu0 0
        %853 = vmatprep.subr.bf16.mxu0 0
        %854 = vmatpush1.bf16.msra.mxu0 0
        %855 = vmatprep.subr.bf16.mxu0 0
        %856 = vmatpush1.bf16.msra.mxu0 0
        %857 = vmatprep.subr.bf16.mxu0 0
        %858 = vmatpush1.bf16.msra.mxu0 0
        %859 = vmatprep.subr.bf16.mxu0 0
        %860 = vmatpush1.bf16.msra.mxu0 0
        %861 = vmatprep.subr.bf16.mxu0 0
        %862 = vmatpush1.bf16.msra.mxu0 0
        %863 = vmatprep.subr.bf16.mxu0 0
        %864 = vmatpush1.bf16.msra.mxu0 0
        %865 = vmatprep.subr.bf16.mxu0 0
        %866 = vmatpush1.bf16.msra.mxu0 0
        %867 = vmatprep.subr.bf16.mxu0 0
        %868 = vmatpush1.bf16.msra.mxu0 0
        %869 = vmatprep.subr.bf16.mxu0 0
        %870 = vmatpush1.bf16.msra.mxu0 0
        %871 = vmatprep.subr.bf16.mxu0 0
        %872 = vmatpush1.bf16.msra.mxu0 0
        %873 = vmatprep.subr.bf16.mxu0 0
        %874 = vmatpush1.bf16.msra.mxu0 0
        %875 = vmatprep.subr.bf16.mxu0 0
        %876 = vmatpush1.bf16.msra.mxu0 0
        %877 = vmatprep.subr.bf16.mxu0 0
        %878 = vmatpush1.bf16.msra.mxu0 0
        %879 = vmatprep.subr.bf16.mxu0 0
        %880 = vmatpush1.bf16.msra.mxu0 0
        %881 = vmatprep.mubr.bf16.mxu0 0
        %882 = vmatmul.mubr.bf16.gmra.mrb[0].mxu0 %v642
        %v883 = vpop.f32.mrb[0].mxu0
        %v884 = vadd.f32 0.0, %v883
        %v885 = vpop.f32.mrb[0].mxu0
        %v886 = vpop.f32.mrb[0].mxu0
        %v887 = vadd.f32 0.0, %v886
        %v888 = vpop.f32.mrb[0].mxu0
        %889 = vdwg.mxu0
        %890 = vmatprep.subr.bf16.mxu0 0
        %891 = vmatpush1.bf16.msra.mxu0 %v625
        %892 = vmatprep.subr.bf16.mxu0 0
        %893 = vmatpush1.bf16.msra.mxu0 0
        %894 = vmatprep.subr.bf16.mxu0 0
        %895 = vmatpush1.bf16.msra.mxu0 0
        %896 = vmatprep.subr.bf16.mxu0 0
        %897 = vmatpush1.bf16.msra.mxu0 0
        %898 = vmatprep.subr.bf16.mxu0 0
        %899 = vmatpush1.bf16.msra.mxu0 0
        %900 = vmatprep.subr.bf16.mxu0 0
        %901 = vmatpush1.bf16.msra.mxu0 0
        %902 = vmatprep.subr.bf16.mxu0 0
        %903 = vmatpush1.bf16.msra.mxu0 0
        %904 = vmatprep.subr.bf16.mxu0 0
        %905 = vmatpush1.bf16.msra.mxu0 0
        %906 = vmatprep.subr.bf16.mxu0 0
        %907 = vmatpush1.bf16.msra.mxu0 0
        %908 = vmatprep.subr.bf16.mxu0 0
        %909 = vmatpush1.bf16.msra.mxu0 0
        %910 = vmatprep.subr.bf16.mxu0 0
        %911 = vmatpush1.bf16.msra.mxu0 0
        %912 = vmatprep.subr.bf16.mxu0 0
        %913 = vmatpush1.bf16.msra.mxu0 0
        %914 = vmatprep.subr.bf16.mxu0 0
        %915 = vmatpush1.bf16.msra.mxu0 0
        %916 = vmatprep.subr.bf16.mxu0 0
        %917 = vmatpush1.bf16.msra.mxu0 0
        %918 = vmatprep.subr.bf16.mxu0 0
        %919 = vmatpush1.bf16.msra.mxu0 0
        %920 = vmatprep.subr.bf16.mxu0 0
        %921 = vmatpush1.bf16.msra.mxu0 0
        %922 = vmatprep.mubr.bf16.mxu0 0
        %923 = vmatmul.mubr.bf16.gmra.mrb[0].mxu0 %v642
        %v924 = vpop.f32.mrb[0].mxu0
        %v925 = vadd.f32 0.0, %v924
        %v926 = vpop.f32.mrb[0].mxu0
        %v927 = vpop.f32.mrb[0].mxu0
        %v928 = vadd.f32 0.0, %v927
        %v929 = vpop.f32.mrb[0].mxu0
        %930 = vdwg.mxu0
        %931 = vmatprep.subr.bf16.mxu0 0
        %932 = vmatpush1.bf16.msra.mxu0 %v626
        %933 = vmatprep.subr.bf16.mxu0 0
        %934 = vmatpush1.bf16.msra.mxu0 0
        %935 = vmatprep.subr.bf16.mxu0 0
        %936 = vmatpush1.bf16.msra.mxu0 0
        %937 = vmatprep.subr.bf16.mxu0 0
        %938 = vmatpush1.bf16.msra.mxu0 0
        %939 = vmatprep.subr.bf16.mxu0 0
        %940 = vmatpush1.bf16.msra.mxu0 0
        %941 = vmatprep.subr.bf16.mxu0 0
        %942 = vmatpush1.bf16.msra.mxu0 0
        %943 = vmatprep.subr.bf16.mxu0 0
        %944 = vmatpush1.bf16.msra.mxu0 0
        %945 = vmatprep.subr.bf16.mxu0 0
        %946 = vmatpush1.bf16.msra.mxu0 0
        %947 = vmatprep.subr.bf16.mxu0 0
        %948 = vmatpush1.bf16.msra.mxu0 0
        %949 = vmatprep.subr.bf16.mxu0 0
        %950 = vmatpush1.bf16.msra.mxu0 0
        %951 = vmatprep.subr.bf16.mxu0 0
        %952 = vmatpush1.bf16.msra.mxu0 0
        %953 = vmatprep.subr.bf16.mxu0 0
        %954 = vmatpush1.bf16.msra.mxu0 0
        %955 = vmatprep.subr.bf16.mxu0 0
        %956 = vmatpush1.bf16.msra.mxu0 0
        %957 = vmatprep.subr.bf16.mxu0 0
        %958 = vmatpush1.bf16.msra.mxu0 0
        %959 = vmatprep.subr.bf16.mxu0 0
        %960 = vmatpush1.bf16.msra.mxu0 0
        %961 = vmatprep.subr.bf16.mxu0 0
        %962 = vmatpush1.bf16.msra.mxu0 0
        %963 = vmatprep.mubr.bf16.mxu0 0
        %964 = vmatmul.mubr.bf16.gmra.mrb[0].mxu0 %v642
        %v965 = vpop.f32.mrb[0].mxu0
        %v966 = vadd.f32 0.0, %v965
        %v967 = vpop.f32.mrb[0].mxu0
        %v968 = vpop.f32.mrb[0].mxu0
        %v969 = vadd.f32 0.0, %v968
        %v970 = vpop.f32.mrb[0].mxu0
        %971 = vdwg.mxu0
        %972 = vmatprep.subr.bf16.mxu0 0
        %973 = vmatpush1.bf16.msra.mxu0 %v627
        %974 = vmatprep.subr.bf16.mxu0 0
        %975 = vmatpush1.bf16.msra.mxu0 0
        %976 = vmatprep.subr.bf16.mxu0 0
        %977 = vmatpush1.bf16.msra.mxu0 0
        %978 = vmatprep.subr.bf16.mxu0 0
        %979 = vmatpush1.bf16.msra.mxu0 0
        %980 = vmatprep.subr.bf16.mxu0 0
        %981 = vmatpush1.bf16.msra.mxu0 0
        %982 = vmatprep.subr.bf16.mxu0 0
        %983 = vmatpush1.bf16.msra.mxu0 0
        %984 = vmatprep.subr.bf16.mxu0 0
        %985 = vmatpush1.bf16.msra.mxu0 0
        %986 = vmatprep.subr.bf16.mxu0 0
        %987 = vmatpush1.bf16.msra.mxu0 0
        %988 = vmatprep.subr.bf16.mxu0 0
        %989 = vmatpush1.bf16.msra.mxu0 0
        %990 = vmatprep.subr.bf16.mxu0 0
        %991 = vmatpush1.bf16.msra.mxu0 0
        %992 = vmatprep.subr.bf16.mxu0 0
        %993 = vmatpush1.bf16.msra.mxu0 0
        %994 = vmatprep.subr.bf16.mxu0 0
        %995 = vmatpush1.bf16.msra.mxu0 0
        %996 = vmatprep.subr.bf16.mxu0 0
        %997 = vmatpush1.bf16.msra.mxu0 0
        %998 = vmatprep.subr.bf16.mxu0 0
        %999 = vmatpush1.bf16.msra.mxu0 0
        %1000 = vmatprep.subr.bf16.mxu0 0
        %1001 = vmatpush1.bf16.msra.mxu0 0
        %1002 = vmatprep.subr.bf16.mxu0 0
        %1003 = vmatpush1.bf16.msra.mxu0 0
        %1004 = vmatprep.mubr.bf16.mxu0 0
        %1005 = vmatmul.mubr.bf16.gmra.mrb[0].mxu0 %v642
        %v1006 = vpop.f32.mrb[0].mxu0
        %v1007 = vadd.f32 0.0, %v1006
        %v1008 = vpop.f32.mrb[0].mxu0
        %v1009 = vpop.f32.mrb[0].mxu0
        %v1010 = vadd.f32 0.0, %v1009
        %v1011 = vpop.f32.mrb[0].mxu0
        %1012 = vdwg.mxu0
        %1013 = vmatprep.subr.bf16.mxu0 0
        %1014 = vmatpush1.bf16.msra.mxu0 %v628
        %1015 = vmatprep.subr.bf16.mxu0 0
        %1016 = vmatpush1.bf16.msra.mxu0 0
        %1017 = vmatprep.subr.bf16.mxu0 0
        %1018 = vmatpush1.bf16.msra.mxu0 0
        %1019 = vmatprep.subr.bf16.mxu0 0
        %1020 = vmatpush1.bf16.msra.mxu0 0
        %1021 = vmatprep.subr.bf16.mxu0 0
        %1022 = vmatpush1.bf16.msra.mxu0 0
        %1023 = vmatprep.subr.bf16.mxu0 0
        %1024 = vmatpush1.bf16.msra.mxu0 0
        %1025 = vmatprep.subr.bf16.mxu0 0
        %1026 = vmatpush1.bf16.msra.mxu0 0
        %1027 = vmatprep.subr.bf16.mxu0 0
        %1028 = vmatpush1.bf16.msra.mxu0 0
        %1029 = vmatprep.subr.bf16.mxu0 0
        %1030 = vmatpush1.bf16.msra.mxu0 0
        %1031 = vmatprep.subr.bf16.mxu0 0
        %1032 = vmatpush1.bf16.msra.mxu0 0
        %1033 = vmatprep.subr.bf16.mxu0 0
        %1034 = vmatpush1.bf16.msra.mxu0 0
        %1035 = vmatprep.subr.bf16.mxu0 0
        %1036 = vmatpush1.bf16.msra.mxu0 0
        %1037 = vmatprep.subr.bf16.mxu0 0
        %1038 = vmatpush1.bf16.msra.mxu0 0
        %1039 = vmatprep.subr.bf16.mxu0 0
        %1040 = vmatpush1.bf16.msra.mxu0 0
        %1041 = vmatprep.subr.bf16.mxu0 0
        %1042 = vmatpush1.bf16.msra.mxu0 0
        %1043 = vmatprep.subr.bf16.mxu0 0
        %1044 = vmatpush1.bf16.msra.mxu0 0
        %1045 = vmatprep.mubr.bf16.mxu0 0
        %1046 = vmatmul.mubr.bf16.gmra.mrb[0].mxu0 %v642
        %v1047 = vpop.f32.mrb[0].mxu0
        %v1048 = vadd.f32 0.0, %v1047
        %v1049 = vpop.f32.mrb[0].mxu0
        %v1050 = vpop.f32.mrb[0].mxu0
        %v1051 = vadd.f32 0.0, %v1050
        %v1052 = vpop.f32.mrb[0].mxu0
        %1053 = vdwg.mxu0
        %1054 = vmatprep.subr.bf16.mxu0 0
        %1055 = vmatpush1.bf16.msra.mxu0 %v629
        %1056 = vmatprep.subr.bf16.mxu0 0
        %1057 = vmatpush1.bf16.msra.mxu0 0
        %1058 = vmatprep.subr.bf16.mxu0 0
        %1059 = vmatpush1.bf16.msra.mxu0 0
        %1060 = vmatprep.subr.bf16.mxu0 0
        %1061 = vmatpush1.bf16.msra.mxu0 0
        %1062 = vmatprep.subr.bf16.mxu0 0
        %1063 = vmatpush1.bf16.msra.mxu0 0
        %1064 = vmatprep.subr.bf16.mxu0 0
        %1065 = vmatpush1.bf16.msra.mxu0 0
        %1066 = vmatprep.subr.bf16.mxu0 0
        %1067 = vmatpush1.bf16.msra.mxu0 0
        %1068 = vmatprep.subr.bf16.mxu0 0
        %1069 = vmatpush1.bf16.msra.mxu0 0
        %1070 = vmatprep.subr.bf16.mxu0 0
        %1071 = vmatpush1.bf16.msra.mxu0 0
        %1072 = vmatprep.subr.bf16.mxu0 0
        %1073 = vmatpush1.bf16.msra.mxu0 0
        %1074 = vmatprep.subr.bf16.mxu0 0
        %1075 = vmatpush1.bf16.msra.mxu0 0
        %1076 = vmatprep.subr.bf16.mxu0 0
        %1077 = vmatpush1.bf16.msra.mxu0 0
        %1078 = vmatprep.subr.bf16.mxu0 0
        %1079 = vmatpush1.bf16.msra.mxu0 0
        %1080 = vmatprep.subr.bf16.mxu0 0
        %1081 = vmatpush1.bf16.msra.mxu0 0
        %1082 = vmatprep.subr.bf16.mxu0 0
        %1083 = vmatpush1.bf16.msra.mxu0 0
        %1084 = vmatprep.subr.bf16.mxu0 0
        %1085 = vmatpush1.bf16.msra.mxu0 0
        %1086 = vmatprep.mubr.bf16.mxu0 0
        %1087 = vmatmul.mubr.bf16.gmra.mrb[0].mxu0 %v642
        %v1088 = vpop.f32.mrb[0].mxu0
        %v1089 = vadd.f32 0.0, %v1088
        %v1090 = vpop.f32.mrb[0].mxu0
        %v1091 = vpop.f32.mrb[0].mxu0
        %v1092 = vadd.f32 0.0, %v1091
        %v1093 = vpop.f32.mrb[0].mxu0
        %1094 = vdwg.mxu0
        %1095 = vmatprep.subr.bf16.mxu0 0
        %1096 = vmatpush1.bf16.msra.mxu0 %v630
        %1097 = vmatprep.subr.bf16.mxu0 0
        %1098 = vmatpush1.bf16.msra.mxu0 0
        %1099 = vmatprep.subr.bf16.mxu0 0
        %1100 = vmatpush1.bf16.msra.mxu0 0
        %1101 = vmatprep.subr.bf16.mxu0 0
        %1102 = vmatpush1.bf16.msra.mxu0 0
        %1103 = vmatprep.subr.bf16.mxu0 0
        %1104 = vmatpush1.bf16.msra.mxu0 0
        %1105 = vmatprep.subr.bf16.mxu0 0
        %1106 = vmatpush1.bf16.msra.mxu0 0
        %1107 = vmatprep.subr.bf16.mxu0 0
        %1108 = vmatpush1.bf16.msra.mxu0 0
        %1109 = vmatprep.subr.bf16.mxu0 0
        %1110 = vmatpush1.bf16.msra.mxu0 0
        %1111 = vmatprep.subr.bf16.mxu0 0
        %1112 = vmatpush1.bf16.msra.mxu0 0
        %1113 = vmatprep.subr.bf16.mxu0 0
        %1114 = vmatpush1.bf16.msra.mxu0 0
        %1115 = vmatprep.subr.bf16.mxu0 0
        %1116 = vmatpush1.bf16.msra.mxu0 0
        %1117 = vmatprep.subr.bf16.mxu0 0
        %1118 = vmatpush1.bf16.msra.mxu0 0
        %1119 = vmatprep.subr.bf16.mxu0 0
        %1120 = vmatpush1.bf16.msra.mxu0 0
        %1121 = vmatprep.subr.bf16.mxu0 0
        %1122 = vmatpush1.bf16.msra.mxu0 0
        %1123 = vmatprep.subr.bf16.mxu0 0
        %1124 = vmatpush1.bf16.msra.mxu0 0
        %1125 = vmatprep.subr.bf16.mxu0 0
        %1126 = vmatpush1.bf16.msra.mxu0 0
        %1127 = vmatprep.mubr.bf16.mxu0 0
        %1128 = vmatmul.mubr.bf16.gmra.mrb[0].mxu0 %v642
        %v1129 = vpop.f32.mrb[0].mxu0
        %v1130 = vadd.f32 0.0, %v1129
        %v1131 = vpop.f32.mrb[0].mxu0
        %v1132 = vpop.f32.mrb[0].mxu0
        %v1133 = vadd.f32 0.0, %v1132
        %v1134 = vpop.f32.mrb[0].mxu0
        %1135 = vdwg.mxu0
        %1136 = vmatprep.subr.bf16.mxu0 0
        %1137 = vmatpush1.bf16.msra.mxu0 %v631
        %1138 = vmatprep.subr.bf16.mxu0 0
        %1139 = vmatpush1.bf16.msra.mxu0 0
        %1140 = vmatprep.subr.bf16.mxu0 0
        %1141 = vmatpush1.bf16.msra.mxu0 0
        %1142 = vmatprep.subr.bf16.mxu0 0
        %1143 = vmatpush1.bf16.msra.mxu0 0
        %1144 = vmatprep.subr.bf16.mxu0 0
        %1145 = vmatpush1.bf16.msra.mxu0 0
        %1146 = vmatprep.subr.bf16.mxu0 0
        %1147 = vmatpush1.bf16.msra.mxu0 0
        %1148 = vmatprep.subr.bf16.mxu0 0
        %1149 = vmatpush1.bf16.msra.mxu0 0
        %1150 = vmatprep.subr.bf16.mxu0 0
        %1151 = vmatpush1.bf16.msra.mxu0 0
        %1152 = vmatprep.subr.bf16.mxu0 0
        %1153 = vmatpush1.bf16.msra.mxu0 0
        %1154 = vmatprep.subr.bf16.mxu0 0
        %1155 = vmatpush1.bf16.msra.mxu0 0
        %1156 = vmatprep.subr.bf16.mxu0 0
        %1157 = vmatpush1.bf16.msra.mxu0 0
        %1158 = vmatprep.subr.bf16.mxu0 0
        %1159 = vmatpush1.bf16.msra.mxu0 0
        %1160 = vmatprep.subr.bf16.mxu0 0
        %1161 = vmatpush1.bf16.msra.mxu0 0
        %1162 = vmatprep.subr.bf16.mxu0 0
        %1163 = vmatpush1.bf16.msra.mxu0 0
        %1164 = vmatprep.subr.bf16.mxu0 0
        %1165 = vmatpush1.bf16.msra.mxu0 0
        %1166 = vmatprep.subr.bf16.mxu0 0
        %1167 = vmatpush1.bf16.msra.mxu0 0
        %1168 = vmatprep.mubr.bf16.mxu0 0
        %1169 = vmatmul.mubr.bf16.gmra.mrb[0].mxu0 %v642
        %v1170 = vpop.f32.mrb[0].mxu0
        %v1171 = vadd.f32 0.0, %v1170
        %v1172 = vpop.f32.mrb[0].mxu0
        %v1173 = vpop.f32.mrb[0].mxu0
        %v1174 = vadd.f32 0.0, %v1173
        %v1175 = vpop.f32.mrb[0].mxu0
        %1176 = vdwg.mxu0
        %1177 = vmatprep.subr.bf16.mxu0 0
        %1178 = vmatpush1.bf16.msra.mxu0 %v632
        %1179 = vmatprep.subr.bf16.mxu0 0
        %1180 = vmatpush1.bf16.msra.mxu0 0
        %1181 = vmatprep.subr.bf16.mxu0 0
        %1182 = vmatpush1.bf16.msra.mxu0 0
        %1183 = vmatprep.subr.bf16.mxu0 0
        %1184 = vmatpush1.bf16.msra.mxu0 0
        %1185 = vmatprep.subr.bf16.mxu0 0
        %1186 = vmatpush1.bf16.msra.mxu0 0
        %1187 = vmatprep.subr.bf16.mxu0 0
        %1188 = vmatpush1.bf16.msra.mxu0 0
        %1189 = vmatprep.subr.bf16.mxu0 0
        %1190 = vmatpush1.bf16.msra.mxu0 0
        %1191 = vmatprep.subr.bf16.mxu0 0
        %1192 = vmatpush1.bf16.msra.mxu0 0
        %1193 = vmatprep.subr.bf16.mxu0 0
        %1194 = vmatpush1.bf16.msra.mxu0 0
        %1195 = vmatprep.subr.bf16.mxu0 0
        %1196 = vmatpush1.bf16.msra.mxu0 0
        %1197 = vmatprep.subr.bf16.mxu0 0
        %1198 = vmatpush1.bf16.msra.mxu0 0
        %1199 = vmatprep.subr.bf16.mxu0 0
        %1200 = vmatpush1.bf16.msra.mxu0 0
        %1201 = vmatprep.subr.bf16.mxu0 0
        %1202 = vmatpush1.bf16.msra.mxu0 0
        %1203 = vmatprep.subr.bf16.mxu0 0
        %1204 = vmatpush1.bf16.msra.mxu0 0
        %1205 = vmatprep.subr.bf16.mxu0 0
        %1206 = vmatpush1.bf16.msra.mxu0 0
        %1207 = vmatprep.subr.bf16.mxu0 0
        %1208 = vmatpush1.bf16.msra.mxu0 0
        %1209 = vmatprep.mubr.bf16.mxu0 0
        %1210 = vmatmul.mubr.bf16.gmra.mrb[0].mxu0 %v642
        %v1211 = vpop.f32.mrb[0].mxu0
        %v1212 = vadd.f32 0.0, %v1211
        %v1213 = vpop.f32.mrb[0].mxu0
        %v1214 = vpop.f32.mrb[0].mxu0
        %v1215 = vadd.f32 0.0, %v1214
        %v1216 = vpop.f32.mrb[0].mxu0
        %1217 = vdwg.mxu0
        %1218 = vmatprep.subr.bf16.mxu0 0
        %1219 = vmatpush1.bf16.msra.mxu0 %v633
        %1220 = vmatprep.subr.bf16.mxu0 0
        %1221 = vmatpush1.bf16.msra.mxu0 0
        %1222 = vmatprep.subr.bf16.mxu0 0
        %1223 = vmatpush1.bf16.msra.mxu0 0
        %1224 = vmatprep.subr.bf16.mxu0 0
        %1225 = vmatpush1.bf16.msra.mxu0 0
        %1226 = vmatprep.subr.bf16.mxu0 0
        %1227 = vmatpush1.bf16.msra.mxu0 0
        %1228 = vmatprep.subr.bf16.mxu0 0
        %1229 = vmatpush1.bf16.msra.mxu0 0
        %1230 = vmatprep.subr.bf16.mxu0 0
        %1231 = vmatpush1.bf16.msra.mxu0 0
        %1232 = vmatprep.subr.bf16.mxu0 0
        %1233 = vmatpush1.bf16.msra.mxu0 0
        %1234 = vmatprep.subr.bf16.mxu0 0
        %1235 = vmatpush1.bf16.msra.mxu0 0
        %1236 = vmatprep.subr.bf16.mxu0 0
        %1237 = vmatpush1.bf16.msra.mxu0 0
        %1238 = vmatprep.subr.bf16.mxu0 0
        %1239 = vmatpush1.bf16.msra.mxu0 0
        %1240 = vmatprep.subr.bf16.mxu0 0
        %1241 = vmatpush1.bf16.msra.mxu0 0
        %1242 = vmatprep.subr.bf16.mxu0 0
        %1243 = vmatpush1.bf16.msra.mxu0 0
        %1244 = vmatprep.subr.bf16.mxu0 0
        %1245 = vmatpush1.bf16.msra.mxu0 0
        %1246 = vmatprep.subr.bf16.mxu0 0
        %1247 = vmatpush1.bf16.msra.mxu0 0
        %1248 = vmatprep.subr.bf16.mxu0 0
        %1249 = vmatpush1.bf16.msra.mxu0 0
        %1250 = vmatprep.mubr.bf16.mxu0 0
        %1251 = vmatmul.mubr.bf16.gmra.mrb[0].mxu0 %v642
        %v1252 = vpop.f32.mrb[0].mxu0
        %v1253 = vadd.f32 0.0, %v1252
        %v1254 = vpop.f32.mrb[0].mxu0
        %v1255 = vpop.f32.mrb[0].mxu0
        %v1256 = vadd.f32 0.0, %v1255
        %v1257 = vpop.f32.mrb[0].mxu0
        %1258 = vdwg.mxu0
        %1259 = vmatprep.subr.bf16.mxu0 0
        %1260 = vmatpush1.bf16.msra.mxu0 %v634
        %1261 = vmatprep.subr.bf16.mxu0 0
        %1262 = vmatpush1.bf16.msra.mxu0 0
        %1263 = vmatprep.subr.bf16.mxu0 0
        %1264 = vmatpush1.bf16.msra.mxu0 0
        %1265 = vmatprep.subr.bf16.mxu0 0
        %1266 = vmatpush1.bf16.msra.mxu0 0
        %1267 = vmatprep.subr.bf16.mxu0 0
        %1268 = vmatpush1.bf16.msra.mxu0 0
        %1269 = vmatprep.subr.bf16.mxu0 0
        %1270 = vmatpush1.bf16.msra.mxu0 0
        %1271 = vmatprep.subr.bf16.mxu0 0
        %1272 = vmatpush1.bf16.msra.mxu0 0
        %1273 = vmatprep.subr.bf16.mxu0 0
        %1274 = vmatpush1.bf16.msra.mxu0 0
        %1275 = vmatprep.subr.bf16.mxu0 0
        %1276 = vmatpush1.bf16.msra.mxu0 0
        %1277 = vmatprep.subr.bf16.mxu0 0
        %1278 = vmatpush1.bf16.msra.mxu0 0
        %1279 = vmatprep.subr.bf16.mxu0 0
        %1280 = vmatpush1.bf16.msra.mxu0 0
        %1281 = vmatprep.subr.bf16.mxu0 0
        %1282 = vmatpush1.bf16.msra.mxu0 0
        %1283 = vmatprep.subr.bf16.mxu0 0
        %1284 = vmatpush1.bf16.msra.mxu0 0
        %1285 = vmatprep.subr.bf16.mxu0 0
        %1286 = vmatpush1.bf16.msra.mxu0 0
        %1287 = vmatprep.subr.bf16.mxu0 0
        %1288 = vmatpush1.bf16.msra.mxu0 0
        %1289 = vmatprep.subr.bf16.mxu0 0
        %1290 = vmatpush1.bf16.msra.mxu0 0
        %1291 = vmatprep.mubr.bf16.mxu0 0
        %1292 = vmatmul.mubr.bf16.gmra.mrb[0].mxu0 %v642
        %v1293 = vpop.f32.mrb[0].mxu0
        %v1294 = vadd.f32 0.0, %v1293
        %v1295 = vpop.f32.mrb[0].mxu0
        %v1296 = vpop.f32.mrb[0].mxu0
        %v1297 = vadd.f32 0.0, %v1296
        %v1298 = vpop.f32.mrb[0].mxu0
        %1299 = vdwg.mxu0
        %v1300 = vld [vmem:[%s3] sm:$0x1]
        %v1302 = vlaneseq
        %v1303 = vshrl.u32 %v1302, 7
        %v1304 = vsub.s32 0, %v1303
        %v1305 = vrot.slane %v1300, %v1304
        %v1307 = vmul.f32 %v1305, %v679
        %v1308 = vmul.f32 %v1305, %v682
        %v1309 = vmul.f32 %v1305, %v720
        %v1310 = vmul.f32 %v1305, %v723
        %v1311 = vmul.f32 %v1305, %v761
        %v1312 = vmul.f32 %v1305, %v764
        %v1313 = vmul.f32 %v1305, %v802
        %v1314 = vmul.f32 %v1305, %v805
        %v1315 = vmul.f32 %v1305, %v843
        %v1316 = vmul.f32 %v1305, %v846
        %v1317 = vmul.f32 %v1305, %v884
        %v1318 = vmul.f32 %v1305, %v887
        %v1319 = vmul.f32 %v1305, %v925
        %v1320 = vmul.f32 %v1305, %v928
        %v1321 = vmul.f32 %v1305, %v966
        %v1322 = vmul.f32 %v1305, %v969
        %v1323 = vmul.f32 %v1305, %v1007
        %v1324 = vmul.f32 %v1305, %v1010
        %v1325 = vmul.f32 %v1305, %v1048
        %v1326 = vmul.f32 %v1305, %v1051
        %v1327 = vmul.f32 %v1305, %v1089
        %v1328 = vmul.f32 %v1305, %v1092
        %v1329 = vmul.f32 %v1305, %v1130
        %v1330 = vmul.f32 %v1305, %v1133
        %v1331 = vmul.f32 %v1305, %v1171
        %v1332 = vmul.f32 %v1305, %v1174
        %v1333 = vmul.f32 %v1305, %v1212
        %v1334 = vmul.f32 %v1305, %v1215
        %v1335 = vmul.f32 %v1305, %v1253
        %v1336 = vmul.f32 %v1305, %v1256
        %v1337 = vmul.f32 %v1305, %v1294
        %v1338 = vmul.f32 %v1305, %v1297
        %v1339 = vadd.f32 %v585, %v1307
        %v1340 = vadd.f32 %v586, %v1308
        %v1341 = vadd.f32 %v587, %v1309
        %v1342 = vadd.f32 %v588, %v1310
        %v1343 = vadd.f32 %v589, %v1311
        %v1344 = vadd.f32 %v590, %v1312
        %v1345 = vadd.f32 %v591, %v1313
        %v1346 = vadd.f32 %v592, %v1314
        %v1347 = vadd.f32 %v593, %v1315
        %v1348 = vadd.f32 %v594, %v1316
        %v1349 = vadd.f32 %v595, %v1317
        %v1350 = vadd.f32 %v596, %v1318
        %v1351 = vadd.f32 %v597, %v1319
        %v1352 = vadd.f32 %v598, %v1320
        %v1353 = vadd.f32 %v599, %v1321
        %v1354 = vadd.f32 %v600, %v1322
        %v1355 = vadd.f32 %v601, %v1323
        %v1356 = vadd.f32 %v602, %v1324
        %v1357 = vadd.f32 %v603, %v1325
        %v1358 = vadd.f32 %v604, %v1326
        %v1359 = vadd.f32 %v605, %v1327
        %v1360 = vadd.f32 %v606, %v1328
        %v1361 = vadd.f32 %v607, %v1329
        %v1362 = vadd.f32 %v608, %v1330
        %v1363 = vadd.f32 %v609, %v1331
        %v1364 = vadd.f32 %v610, %v1332
        %v1365 = vadd.f32 %v611, %v1333
        %v1366 = vadd.f32 %v612, %v1334
        %v1367 = vadd.f32 %v613, %v1335
        %v1368 = vadd.f32 %v614, %v1336
        %v1369 = vadd.f32 %v615, %v1337
        %v1370 = vadd.f32 %v616, %v1338
        %v1371 = vld [vmem:[#allocation5] sm:$0xff]
        %v1372 = vld [vmem:[#allocation5 + $0x8] sm:$0xff]
        %v1373 = vadd.f32 %v1339, %v1371
        %v1374 = vadd.f32 %v1340, %v1372
        %v1375 = vadd.f32 %v1341, %v1371
        %v1376 = vadd.f32 %v1342, %v1372
        %v1377 = vadd.f32 %v1343, %v1371
        %v1378 = vadd.f32 %v1344, %v1372
        %v1379 = vadd.f32 %v1345, %v1371
        %v1380 = vadd.f32 %v1346, %v1372
        %v1381 = vadd.f32 %v1347, %v1371
        %v1382 = vadd.f32 %v1348, %v1372
        %v1383 = vadd.f32 %v1349, %v1371
        %v1384 = vadd.f32 %v1350, %v1372
        %v1385 = vadd.f32 %v1351, %v1371
        %v1386 = vadd.f32 %v1352, %v1372
        %v1387 = vadd.f32 %v1353, %v1371
        %v1388 = vadd.f32 %v1354, %v1372
        %v1389 = vadd.f32 %v1355, %v1371
        %v1390 = vadd.f32 %v1356, %v1372
        %v1391 = vadd.f32 %v1357, %v1371
        %v1392 = vadd.f32 %v1358, %v1372
        %v1393 = vadd.f32 %v1359, %v1371
        %v1394 = vadd.f32 %v1360, %v1372
        %v1395 = vadd.f32 %v1361, %v1371
        %v1396 = vadd.f32 %v1362, %v1372
        %v1397 = vadd.f32 %v1363, %v1371
        %v1398 = vadd.f32 %v1364, %v1372
        %v1399 = vadd.f32 %v1365, %v1371
        %v1400 = vadd.f32 %v1366, %v1372
        %v1401 = vadd.f32 %v1367, %v1371
        %v1402 = vadd.f32 %v1368, %v1372
        %v1403 = vadd.f32 %v1369, %v1371
        %v1404 = vadd.f32 %v1370, %v1372
        %v1405 = vld [vmem:[%s6] sm:$0x1]
        %v1407 = vlaneseq
        %v1408 = vshrl.u32 %v1407, 7
        %v1409 = vsub.s32 0, %v1408
        %v1410 = vrot.slane %v1405, %v1409
        %v1412 = vmul.f32 %v1373, %v1410
        %v1413 = vmul.f32 %v1374, %v1410
        %v1414 = vmul.f32 %v1375, %v1410
        %v1415 = vmul.f32 %v1376, %v1410
        %v1416 = vmul.f32 %v1377, %v1410
        %v1417 = vmul.f32 %v1378, %v1410
        %v1418 = vmul.f32 %v1379, %v1410
        %v1419 = vmul.f32 %v1380, %v1410
        %v1420 = vmul.f32 %v1381, %v1410
        %v1421 = vmul.f32 %v1382, %v1410
        %v1422 = vmul.f32 %v1383, %v1410
        %v1423 = vmul.f32 %v1384, %v1410
        %v1424 = vmul.f32 %v1385, %v1410
        %v1425 = vmul.f32 %v1386, %v1410
        %v1426 = vmul.f32 %v1387, %v1410
        %v1427 = vmul.f32 %v1388, %v1410
        %v1428 = vmul.f32 %v1389, %v1410
        %v1429 = vmul.f32 %v1390, %v1410
        %v1430 = vmul.f32 %v1391, %v1410
        %v1431 = vmul.f32 %v1392, %v1410
        %v1432 = vmul.f32 %v1393, %v1410
        %v1433 = vmul.f32 %v1394, %v1410
        %v1434 = vmul.f32 %v1395, %v1410
        %v1435 = vmul.f32 %v1396, %v1410
        %v1436 = vmul.f32 %v1397, %v1410
        %v1437 = vmul.f32 %v1398, %v1410
        %v1438 = vmul.f32 %v1399, %v1410
        %v1439 = vmul.f32 %v1400, %v1410
        %v1440 = vmul.f32 %v1401, %v1410
        %v1441 = vmul.f32 %v1402, %v1410
        %v1442 = vmul.f32 %v1403, %v1410
        %v1443 = vmul.f32 %v1404, %v1410
        %v1444 = vld [vmem:[%s7] sm:$0x1]
        %v1446 = vlaneseq
        %v1447 = vshrl.u32 %v1446, 7
        %v1448 = vsub.s32 0, %v1447
        %v1449 = vrot.slane %v1444, %v1448
        %v1451 = vadd.f32 %v1412, %v1449
        %v1452 = vadd.f32 %v1413, %v1449
        %v1453 = vadd.f32 %v1414, %v1449
        %v1454 = vadd.f32 %v1415, %v1449
        %v1455 = vadd.f32 %v1416, %v1449
        %v1456 = vadd.f32 %v1417, %v1449
        %v1457 = vadd.f32 %v1418, %v1449
        %v1458 = vadd.f32 %v1419, %v1449
        %v1459 = vadd.f32 %v1420, %v1449
        %v1460 = vadd.f32 %v1421, %v1449
        %v1461 = vadd.f32 %v1422, %v1449
        %v1462 = vadd.f32 %v1423, %v1449
        %v1463 = vadd.f32 %v1424, %v1449
        %v1464 = vadd.f32 %v1425, %v1449
        %v1465 = vadd.f32 %v1426, %v1449
        %v1466 = vadd.f32 %v1427, %v1449
        %v1467 = vadd.f32 %v1428, %v1449
        %v1468 = vadd.f32 %v1429, %v1449
        %v1469 = vadd.f32 %v1430, %v1449
        %v1470 = vadd.f32 %v1431, %v1449
        %v1471 = vadd.f32 %v1432, %v1449
        %v1472 = vadd.f32 %v1433, %v1449
        %v1473 = vadd.f32 %v1434, %v1449
        %v1474 = vadd.f32 %v1435, %v1449
        %v1475 = vadd.f32 %v1436, %v1449
        %v1476 = vadd.f32 %v1437, %v1449
        %v1477 = vadd.f32 %v1438, %v1449
        %v1478 = vadd.f32 %v1439, %v1449
        %v1479 = vadd.f32 %v1440, %v1449
        %v1480 = vadd.f32 %v1441, %v1449
        %v1481 = vadd.f32 %v1442, %v1449
        %v1482 = vadd.f32 %v1443, %v1449
        %v1483 = vpack.c.bf16 %v1452, %v1451
        %v1484 = vpack.c.bf16 %v1454, %v1453
        %v1485 = vpack.c.bf16 %v1456, %v1455
        %v1486 = vpack.c.bf16 %v1458, %v1457
        %v1487 = vpack.c.bf16 %v1460, %v1459
        %v1488 = vpack.c.bf16 %v1462, %v1461
        %v1489 = vpack.c.bf16 %v1464, %v1463
        %v1490 = vpack.c.bf16 %v1466, %v1465
        %v1491 = vpack.c.bf16 %v1468, %v1467
        %v1492 = vpack.c.bf16 %v1470, %v1469
        %v1493 = vpack.c.bf16 %v1472, %v1471
        %v1494 = vpack.c.bf16 %v1474, %v1473
        %v1495 = vpack.c.bf16 %v1476, %v1475
        %v1496 = vpack.c.bf16 %v1478, %v1477
        %v1497 = vpack.c.bf16 %v1480, %v1479
        %v1498 = vpack.c.bf16 %v1482, %v1481
        %v1499 = vld [vmem:[#allocation7] sm:$0xf]
        %v1500 = vld [vmem:[#allocation7 + $0x4] sm:$0xf]
        %v1501 = vld [vmem:[#allocation7 + $0x8] sm:$0xf]
        %v1502 = vld [vmem:[#allocation7 + $0xc] sm:$0xf]
        %v1503 = vld [vmem:[#allocation7 + $0x10] sm:$0xf]
        %v1504 = vld [vmem:[#allocation7 + $0x14] sm:$0xf]
        %v1505 = vld [vmem:[#allocation7 + $0x18] sm:$0xf]
        %v1506 = vld [vmem:[#allocation7 + $0x1c] sm:$0xf]
        %v1507 = vld [vmem:[#allocation7 + $0x20] sm:$0xf]
        %v1508 = vld [vmem:[#allocation7 + $0x24] sm:$0xf]
        %v1509 = vld [vmem:[#allocation7 + $0x28] sm:$0xf]
        %v1510 = vld [vmem:[#allocation7 + $0x2c] sm:$0xf]
        %v1511 = vld [vmem:[#allocation7 + $0x30] sm:$0xf]
        %v1512 = vld [vmem:[#allocation7 + $0x34] sm:$0xf]
        %v1513 = vld [vmem:[#allocation7 + $0x38] sm:$0xf]
        %v1514 = vld [vmem:[#allocation7 + $0x3c] sm:$0xf]
        %v1515 = vld [vmem:[#allocation7 + $0x40] sm:$0xf]
        %v1516 = vld [vmem:[#allocation7 + $0x44] sm:$0xf]
        %v1517 = vld [vmem:[#allocation7 + $0x48] sm:$0xf]
        %v1518 = vld [vmem:[#allocation7 + $0x4c] sm:$0xf]
        %v1519 = vld [vmem:[#allocation7 + $0x50] sm:$0xf]
        %v1520 = vld [vmem:[#allocation7 + $0x54] sm:$0xf]
        %v1521 = vld [vmem:[#allocation7 + $0x58] sm:$0xf]
        %v1522 = vld [vmem:[#allocation7 + $0x5c] sm:$0xf]
        %v1523 = vld [vmem:[#allocation7 + $0x60] sm:$0xf]
        %v1524 = vld [vmem:[#allocation7 + $0x64] sm:$0xf]
        %v1525 = vld [vmem:[#allocation7 + $0x68] sm:$0xf]
        %v1526 = vld [vmem:[#allocation7 + $0x6c] sm:$0xf]
        %v1527 = vld [vmem:[#allocation7 + $0x70] sm:$0xf]
        %v1528 = vld [vmem:[#allocation7 + $0x74] sm:$0xf]
        %v1529 = vld [vmem:[#allocation7 + $0x78] sm:$0xf]
        %v1530 = vld [vmem:[#allocation7 + $0x7c] sm:$0xf]
        %v1531 = vld [vmem:[%s10] sm:$0x3]
        %v1533 = vlaneseq
        %v1534 = vshrl.u32 %v1533, 7
        %v1535 = vsub.s32 0, %v1534
        %v1536 = vrot.slane %v1531, %v1535
        %v1537 = vlaneseq
        %v1538 = vshrl.u32 %v1537, 7
        %v1539 = vsub.s32 1, %v1538
        %v1540 = vrot.slane %v1531, %v1539
        %v1575 = vunpack.c.l.b16 %v1499
        %v1576 = vunpack.c.l.b16 %v1500
        %v1577 = vunpack.c.l.b16 %v1501
        %v1578 = vunpack.c.l.b16 %v1502
        %v1579 = vunpack.c.l.b16 %v1503
        %v1580 = vunpack.c.l.b16 %v1504
        %v1581 = vunpack.c.l.b16 %v1505
        %v1582 = vunpack.c.l.b16 %v1506
        %v1583 = vunpack.c.l.b16 %v1507
        %v1584 = vunpack.c.l.b16 %v1508
        %v1585 = vunpack.c.l.b16 %v1509
        %v1586 = vunpack.c.l.b16 %v1510
        %v1587 = vunpack.c.l.b16 %v1511
        %v1588 = vunpack.c.l.b16 %v1512
        %v1589 = vunpack.c.l.b16 %v1513
        %v1590 = vunpack.c.l.b16 %v1514
        %v1591 = vunpack.c.l.b16 %v1515
        %v1592 = vunpack.c.l.b16 %v1516
        %v1593 = vunpack.c.l.b16 %v1517
        %v1594 = vunpack.c.l.b16 %v1518
        %v1595 = vunpack.c.l.b16 %v1519
        %v1596 = vunpack.c.l.b16 %v1520
        %v1597 = vunpack.c.l.b16 %v1521
        %v1598 = vunpack.c.l.b16 %v1522
        %v1599 = vunpack.c.l.b16 %v1523
        %v1600 = vunpack.c.l.b16 %v1524
        %v1601 = vunpack.c.l.b16 %v1525
        %v1602 = vunpack.c.l.b16 %v1526
        %v1603 = vunpack.c.l.b16 %v1527
        %v1604 = vunpack.c.l.b16 %v1528
        %v1605 = vunpack.c.l.b16 %v1529
        %v1606 = vunpack.c.l.b16 %v1530
        %v1607 = vpack.c.b16 %v1576, %v1575
        %v1608 = vpack.c.b16 %v1578, %v1577
        %v1609 = vpack.c.b16 %v1580, %v1579
        %v1610 = vpack.c.b16 %v1582, %v1581
        %v1611 = vpack.c.b16 %v1584, %v1583
        %v1612 = vpack.c.b16 %v1586, %v1585
        %v1613 = vpack.c.b16 %v1588, %v1587
        %v1614 = vpack.c.b16 %v1590, %v1589
        %v1615 = vpack.c.b16 %v1592, %v1591
        %v1616 = vpack.c.b16 %v1594, %v1593
        %v1617 = vpack.c.b16 %v1596, %v1595
        %v1618 = vpack.c.b16 %v1598, %v1597
        %v1619 = vpack.c.b16 %v1600, %v1599
        %v1620 = vpack.c.b16 %v1602, %v1601
        %v1621 = vpack.c.b16 %v1604, %v1603
        %v1622 = vpack.c.b16 %v1606, %v1605
        %1639 = vmatprep.subr.bf16.mxu0 0
        %1640 = vmatpush1.bf16.xpose.msra.mxu0 %v1607
        %1641 = vmatprep.subr.bf16.mxu0 0
        %1642 = vmatpush1.bf16.xpose.msra.mxu0 %v1608
        %1643 = vmatprep.subr.bf16.mxu0 0
        %1644 = vmatpush1.bf16.xpose.msra.mxu0 %v1609
        %1645 = vmatprep.subr.bf16.mxu0 0
        %1646 = vmatpush1.bf16.xpose.msra.mxu0 %v1610
        %1647 = vmatprep.subr.bf16.mxu0 0
        %1648 = vmatpush1.bf16.xpose.msra.mxu0 %v1611
        %1649 = vmatprep.subr.bf16.mxu0 0
        %1650 = vmatpush1.bf16.xpose.msra.mxu0 %v1612
        %1651 = vmatprep.subr.bf16.mxu0 0
        %1652 = vmatpush1.bf16.xpose.msra.mxu0 %v1613
        %1653 = vmatprep.subr.bf16.mxu0 0
        %1654 = vmatpush1.bf16.xpose.msra.mxu0 %v1614
        %1655 = vmatprep.subr.bf16.mxu0 0
        %1656 = vmatpush1.bf16.xpose.msra.mxu0 %v1615
        %1657 = vmatprep.subr.bf16.mxu0 0
        %1658 = vmatpush1.bf16.xpose.msra.mxu0 %v1616
        %1659 = vmatprep.subr.bf16.mxu0 0
        %1660 = vmatpush1.bf16.xpose.msra.mxu0 %v1617
        %1661 = vmatprep.subr.bf16.mxu0 0
        %1662 = vmatpush1.bf16.xpose.msra.mxu0 %v1618
        %1663 = vmatprep.subr.bf16.mxu0 0
        %1664 = vmatpush1.bf16.xpose.msra.mxu0 %v1619
        %1665 = vmatprep.subr.bf16.mxu0 0
        %1666 = vmatpush1.bf16.xpose.msra.mxu0 %v1620
        %1667 = vmatprep.subr.bf16.mxu0 0
        %1668 = vmatpush1.bf16.xpose.msra.mxu0 %v1621
        %1669 = vmatprep.subr.bf16.mxu0 0
        %1670 = vmatpush1.bf16.xpose.msra.mxu0 %v1622
        %1671 = vmatprep.mubr.bf16.mxu0 0
        %1672 = vmatmul.mubr.bf16.gmra.mrb[0].mxu0 %v1483
        %v1673 = vpop.f32.mrb[0].mxu0
        %v1674 = vadd.f32 %v1536, %v1673
        %v1675 = vpop.f32.mrb[0].mxu0
        %v1676 = vadd.f32 %v1540, %v1675
        %v1677 = vpop.f32.mrb[0].mxu0
        %v1678 = vadd.f32 %v1536, %v1677
        %v1679 = vpop.f32.mrb[0].mxu0
        %v1680 = vadd.f32 %v1540, %v1679
        %1681 = vmatprep.mubr.bf16.mxu0 0
        %1682 = vmatmul.mubr.bf16.gmra.mrb[0].mxu0 %v1484
        %v1683 = vpop.f32.mrb[0].mxu0
        %v1684 = vadd.f32 %v1536, %v1683
        %v1685 = vpop.f32.mrb[0].mxu0
        %v1686 = vadd.f32 %v1540, %v1685
        %v1687 = vpop.f32.mrb[0].mxu0
        %v1688 = vadd.f32 %v1536, %v1687
        %v1689 = vpop.f32.mrb[0].mxu0
        %v1690 = vadd.f32 %v1540, %v1689
        %1691 = vmatprep.mubr.bf16.mxu0 0
        %1692 = vmatmul.mubr.bf16.gmra.mrb[0].mxu0 %v1485
        %v1693 = vpop.f32.mrb[0].mxu0
        %v1694 = vadd.f32 %v1536, %v1693
        %v1695 = vpop.f32.mrb[0].mxu0
        %v1696 = vadd.f32 %v1540, %v1695
        %v1697 = vpop.f32.mrb[0].mxu0
        %v1698 = vadd.f32 %v1536, %v1697
        %v1699 = vpop.f32.mrb[0].mxu0
        %v1700 = vadd.f32 %v1540, %v1699
        %1701 = vmatprep.mubr.bf16.mxu0 0
        %1702 = vmatmul.mubr.bf16.gmra.mrb[0].mxu0 %v1486
        %v1703 = vpop.f32.mrb[0].mxu0
        %v1704 = vadd.f32 %v1536, %v1703
        %v1705 = vpop.f32.mrb[0].mxu0
        %v1706 = vadd.f32 %v1540, %v1705
        %v1707 = vpop.f32.mrb[0].mxu0
        %v1708 = vadd.f32 %v1536, %v1707
        %v1709 = vpop.f32.mrb[0].mxu0
        %v1710 = vadd.f32 %v1540, %v1709
        %1711 = vmatprep.mubr.bf16.mxu0 0
        %1712 = vmatmul.mubr.bf16.gmra.mrb[0].mxu0 %v1487
        %v1713 = vpop.f32.mrb[0].mxu0
        %v1714 = vadd.f32 %v1536, %v1713
        %v1715 = vpop.f32.mrb[0].mxu0
        %v1716 = vadd.f32 %v1540, %v1715
        %v1717 = vpop.f32.mrb[0].mxu0
        %v1718 = vadd.f32 %v1536, %v1717
        %v1719 = vpop.f32.mrb[0].mxu0
        %v1720 = vadd.f32 %v1540, %v1719
        %1721 = vmatprep.mubr.bf16.mxu0 0
        %1722 = vmatmul.mubr.bf16.gmra.mrb[0].mxu0 %v1488
        %v1723 = vpop.f32.mrb[0].mxu0
        %v1724 = vadd.f32 %v1536, %v1723
        %v1725 = vpop.f32.mrb[0].mxu0
        %v1726 = vadd.f32 %v1540, %v1725
        %v1727 = vpop.f32.mrb[0].mxu0
        %v1728 = vadd.f32 %v1536, %v1727
        %v1729 = vpop.f32.mrb[0].mxu0
        %v1730 = vadd.f32 %v1540, %v1729
        %1731 = vmatprep.mubr.bf16.mxu0 0
        %1732 = vmatmul.mubr.bf16.gmra.mrb[0].mxu0 %v1489
        %v1733 = vpop.f32.mrb[0].mxu0
        %v1734 = vadd.f32 %v1536, %v1733
        %v1735 = vpop.f32.mrb[0].mxu0
        %v1736 = vadd.f32 %v1540, %v1735
        %v1737 = vpop.f32.mrb[0].mxu0
        %v1738 = vadd.f32 %v1536, %v1737
        %v1739 = vpop.f32.mrb[0].mxu0
        %v1740 = vadd.f32 %v1540, %v1739
        %1741 = vmatprep.mubr.bf16.mxu0 0
        %1742 = vmatmul.mubr.bf16.gmra.mrb[0].mxu0 %v1490
        %v1743 = vpop.f32.mrb[0].mxu0
        %v1744 = vadd.f32 %v1536, %v1743
        %v1745 = vpop.f32.mrb[0].mxu0
        %v1746 = vadd.f32 %v1540, %v1745
        %v1747 = vpop.f32.mrb[0].mxu0
        %v1748 = vadd.f32 %v1536, %v1747
        %v1749 = vpop.f32.mrb[0].mxu0
        %v1750 = vadd.f32 %v1540, %v1749
        %1751 = vmatprep.mubr.bf16.mxu0 0
        %1752 = vmatmul.mubr.bf16.gmra.mrb[0].mxu0 %v1491
        %v1753 = vpop.f32.mrb[0].mxu0
        %v1754 = vadd.f32 %v1536, %v1753
        %v1755 = vpop.f32.mrb[0].mxu0
        %v1756 = vadd.f32 %v1540, %v1755
        %v1757 = vpop.f32.mrb[0].mxu0
        %v1758 = vadd.f32 %v1536, %v1757
        %v1759 = vpop.f32.mrb[0].mxu0
        %v1760 = vadd.f32 %v1540, %v1759
        %1761 = vmatprep.mubr.bf16.mxu0 0
        %1762 = vmatmul.mubr.bf16.gmra.mrb[0].mxu0 %v1492
        %v1763 = vpop.f32.mrb[0].mxu0
        %v1764 = vadd.f32 %v1536, %v1763
        %v1765 = vpop.f32.mrb[0].mxu0
        %v1766 = vadd.f32 %v1540, %v1765
        %v1767 = vpop.f32.mrb[0].mxu0
        %v1768 = vadd.f32 %v1536, %v1767
        %v1769 = vpop.f32.mrb[0].mxu0
        %v1770 = vadd.f32 %v1540, %v1769
        %1771 = vmatprep.mubr.bf16.mxu0 0
        %1772 = vmatmul.mubr.bf16.gmra.mrb[0].mxu0 %v1493
        %v1773 = vpop.f32.mrb[0].mxu0
        %v1774 = vadd.f32 %v1536, %v1773
        %v1775 = vpop.f32.mrb[0].mxu0
        %v1776 = vadd.f32 %v1540, %v1775
        %v1777 = vpop.f32.mrb[0].mxu0
        %v1778 = vadd.f32 %v1536, %v1777
        %v1779 = vpop.f32.mrb[0].mxu0
        %v1780 = vadd.f32 %v1540, %v1779
        %1781 = vmatprep.mubr.bf16.mxu0 0
        %1782 = vmatmul.mubr.bf16.gmra.mrb[0].mxu0 %v1494
        %v1783 = vpop.f32.mrb[0].mxu0
        %v1784 = vadd.f32 %v1536, %v1783
        %v1785 = vpop.f32.mrb[0].mxu0
        %v1786 = vadd.f32 %v1540, %v1785
        %v1787 = vpop.f32.mrb[0].mxu0
        %v1788 = vadd.f32 %v1536, %v1787
        %v1789 = vpop.f32.mrb[0].mxu0
        %v1790 = vadd.f32 %v1540, %v1789
        %1791 = vmatprep.mubr.bf16.mxu0 0
        %1792 = vmatmul.mubr.bf16.gmra.mrb[0].mxu0 %v1495
        %v1793 = vpop.f32.mrb[0].mxu0
        %v1794 = vadd.f32 %v1536, %v1793
        %v1795 = vpop.f32.mrb[0].mxu0
        %v1796 = vadd.f32 %v1540, %v1795
        %v1797 = vpop.f32.mrb[0].mxu0
        %v1798 = vadd.f32 %v1536, %v1797
        %v1799 = vpop.f32.mrb[0].mxu0
        %v1800 = vadd.f32 %v1540, %v1799
        %1801 = vmatprep.mubr.bf16.mxu0 0
        %1802 = vmatmul.mubr.bf16.gmra.mrb[0].mxu0 %v1496
        %v1803 = vpop.f32.mrb[0].mxu0
        %v1804 = vadd.f32 %v1536, %v1803
        %v1805 = vpop.f32.mrb[0].mxu0
        %v1806 = vadd.f32 %v1540, %v1805
        %v1807 = vpop.f32.mrb[0].mxu0
        %v1808 = vadd.f32 %v1536, %v1807
        %v1809 = vpop.f32.mrb[0].mxu0
        %v1810 = vadd.f32 %v1540, %v1809
        %1811 = vmatprep.mubr.bf16.mxu0 0
        %1812 = vmatmul.mubr.bf16.gmra.mrb[0].mxu0 %v1497
        %v1813 = vpop.f32.mrb[0].mxu0
        %v1814 = vadd.f32 %v1536, %v1813
        %v1815 = vpop.f32.mrb[0].mxu0
        %v1816 = vadd.f32 %v1540, %v1815
        %v1817 = vpop.f32.mrb[0].mxu0
        %v1818 = vadd.f32 %v1536, %v1817
        %v1819 = vpop.f32.mrb[0].mxu0
        %v1820 = vadd.f32 %v1540, %v1819
        %1821 = vmatprep.mubr.bf16.mxu0 0
        %1822 = vmatmul.mubr.bf16.gmra.mrb[0].mxu0 %v1498
        %v1823 = vpop.f32.mrb[0].mxu0
        %v1824 = vadd.f32 %v1536, %v1823
        %v1825 = vpop.f32.mrb[0].mxu0
        %v1826 = vadd.f32 %v1540, %v1825
        %v1827 = vpop.f32.mrb[0].mxu0
        %v1828 = vadd.f32 %v1536, %v1827
        %v1829 = vpop.f32.mrb[0].mxu0
        %v1830 = vadd.f32 %v1540, %v1829
        %1831 = vdwg.mxu0
        %v1832 = vmul.f32 %v1674, 0.5
        %v1833 = vmul.f32 %v1676, 0.5
        %v1834 = vmul.f32 %v1678, 0.5
        %v1835 = vmul.f32 %v1680, 0.5
        %v1836 = vmul.f32 %v1684, 0.5
        %v1837 = vmul.f32 %v1686, 0.5
        %v1838 = vmul.f32 %v1688, 0.5
        %v1839 = vmul.f32 %v1690, 0.5
        %v1840 = vmul.f32 %v1694, 0.5
        %v1841 = vmul.f32 %v1696, 0.5
        %v1842 = vmul.f32 %v1698, 0.5
        %v1843 = vmul.f32 %v1700, 0.5
        %v1844 = vmul.f32 %v1704, 0.5
        %v1845 = vmul.f32 %v1706, 0.5
        %v1846 = vmul.f32 %v1708, 0.5
        %v1847 = vmul.f32 %v1710, 0.5
        %v1848 = vmul.f32 %v1714, 0.5
        %v1849 = vmul.f32 %v1716, 0.5
        %v1850 = vmul.f32 %v1718, 0.5
        %v1851 = vmul.f32 %v1720, 0.5
        %v1852 = vmul.f32 %v1724, 0.5
        %v1853 = vmul.f32 %v1726, 0.5
        %v1854 = vmul.f32 %v1728, 0.5
        %v1855 = vmul.f32 %v1730, 0.5
        %v1856 = vmul.f32 %v1734, 0.5
        %v1857 = vmul.f32 %v1736, 0.5
        %v1858 = vmul.f32 %v1738, 0.5
        %v1859 = vmul.f32 %v1740, 0.5
        %v1860 = vmul.f32 %v1744, 0.5
        %v1861 = vmul.f32 %v1746, 0.5
        %v1862 = vmul.f32 %v1748, 0.5
        %v1863 = vmul.f32 %v1750, 0.5
        %v1864 = vmul.f32 %v1754, 0.5
        %v1865 = vmul.f32 %v1756, 0.5
        %v1866 = vmul.f32 %v1758, 0.5
        %v1867 = vmul.f32 %v1760, 0.5
        %v1868 = vmul.f32 %v1764, 0.5
        %v1869 = vmul.f32 %v1766, 0.5
        %v1870 = vmul.f32 %v1768, 0.5
        %v1871 = vmul.f32 %v1770, 0.5
        %v1872 = vmul.f32 %v1774, 0.5
        %v1873 = vmul.f32 %v1776, 0.5
        %v1874 = vmul.f32 %v1778, 0.5
        %v1875 = vmul.f32 %v1780, 0.5
        %v1876 = vmul.f32 %v1784, 0.5
        %v1877 = vmul.f32 %v1786, 0.5
        %v1878 = vmul.f32 %v1788, 0.5
        %v1879 = vmul.f32 %v1790, 0.5
        %v1880 = vmul.f32 %v1794, 0.5
        %v1881 = vmul.f32 %v1796, 0.5
        %v1882 = vmul.f32 %v1798, 0.5
        %v1883 = vmul.f32 %v1800, 0.5
        %v1884 = vmul.f32 %v1804, 0.5
        %v1885 = vmul.f32 %v1806, 0.5
        %v1886 = vmul.f32 %v1808, 0.5
        %v1887 = vmul.f32 %v1810, 0.5
        %v1888 = vmul.f32 %v1814, 0.5
        %v1889 = vmul.f32 %v1816, 0.5
        %v1890 = vmul.f32 %v1818, 0.5
        %v1891 = vmul.f32 %v1820, 0.5
        %v1892 = vmul.f32 %v1824, 0.5
        %v1893 = vmul.f32 %v1826, 0.5
        %v1894 = vmul.f32 %v1828, 0.5
        %v1895 = vmul.f32 %v1830, 0.5
        %v1896 = vmul.f32 %v1674, 0.044715
        %v1897 = vmul.f32 %v1676, 0.044715
        %v1898 = vmul.f32 %v1678, 0.044715
        %v1899 = vmul.f32 %v1680, 0.044715
        %v1900 = vmul.f32 %v1684, 0.044715
        %v1901 = vmul.f32 %v1686, 0.044715
        %v1902 = vmul.f32 %v1688, 0.044715
        %v1903 = vmul.f32 %v1690, 0.044715
        %v1904 = vmul.f32 %v1694, 0.044715
        %v1905 = vmul.f32 %v1696, 0.044715
        %v1906 = vmul.f32 %v1698, 0.044715
        %v1907 = vmul.f32 %v1700, 0.044715
        %v1908 = vmul.f32 %v1704, 0.044715
        %v1909 = vmul.f32 %v1706, 0.044715
        %v1910 = vmul.f32 %v1708, 0.044715
        %v1911 = vmul.f32 %v1710, 0.044715
        %v1912 = vmul.f32 %v1714, 0.044715
        %v1913 = vmul.f32 %v1716, 0.044715
        %v1914 = vmul.f32 %v1718, 0.044715
        %v1915 = vmul.f32 %v1720, 0.044715
        %v1916 = vmul.f32 %v1724, 0.044715
        %v1917 = vmul.f32 %v1726, 0.044715
        %v1918 = vmul.f32 %v1728, 0.044715
        %v1919 = vmul.f32 %v1730, 0.044715
        %v1920 = vmul.f32 %v1734, 0.044715
        %v1921 = vmul.f32 %v1736, 0.044715
        %v1922 = vmul.f32 %v1738, 0.044715
        %v1923 = vmul.f32 %v1740, 0.044715
        %v1924 = vmul.f32 %v1744, 0.044715
        %v1925 = vmul.f32 %v1746, 0.044715
        %v1926 = vmul.f32 %v1748, 0.044715
        %v1927 = vmul.f32 %v1750, 0.044715
        %v1928 = vmul.f32 %v1754, 0.044715
        %v1929 = vmul.f32 %v1756, 0.044715
        %v1930 = vmul.f32 %v1758, 0.044715
        %v1931 = vmul.f32 %v1760, 0.044715
        %v1932 = vmul.f32 %v1764, 0.044715
        %v1933 = vmul.f32 %v1766, 0.044715
        %v1934 = vmul.f32 %v1768, 0.044715
        %v1935 = vmul.f32 %v1770, 0.044715
        %v1936 = vmul.f32 %v1774, 0.044715
        %v1937 = vmul.f32 %v1776, 0.044715
        %v1938 = vmul.f32 %v1778, 0.044715
        %v1939 = vmul.f32 %v1780, 0.044715
        %v1940 = vmul.f32 %v1784, 0.044715
        %v1941 = vmul.f32 %v1786, 0.044715
        %v1942 = vmul.f32 %v1788, 0.044715
        %v1943 = vmul.f32 %v1790, 0.044715
        %v1944 = vmul.f32 %v1794, 0.044715
        %v1945 = vmul.f32 %v1796, 0.044715
        %v1946 = vmul.f32 %v1798, 0.044715
        %v1947 = vmul.f32 %v1800, 0.044715
        %v1948 = vmul.f32 %v1804, 0.044715
        %v1949 = vmul.f32 %v1806, 0.044715
        %v1950 = vmul.f32 %v1808, 0.044715
        %v1951 = vmul.f32 %v1810, 0.044715
        %v1952 = vmul.f32 %v1814, 0.044715
        %v1953 = vmul.f32 %v1816, 0.044715
        %v1954 = vmul.f32 %v1818, 0.044715
        %v1955 = vmul.f32 %v1820, 0.044715
        %v1956 = vmul.f32 %v1824, 0.044715
        %v1957 = vmul.f32 %v1826, 0.044715
        %v1958 = vmul.f32 %v1828, 0.044715
        %v1959 = vmul.f32 %v1830, 0.044715
        %v1960 = vmul.f32 %v1896, %v1674
        %v1961 = vmul.f32 %v1897, %v1676
        %v1962 = vmul.f32 %v1898, %v1678
        %v1963 = vmul.f32 %v1899, %v1680
        %v1964 = vmul.f32 %v1900, %v1684
        %v1965 = vmul.f32 %v1901, %v1686
        %v1966 = vmul.f32 %v1902, %v1688
        %v1967 = vmul.f32 %v1903, %v1690
        %v1968 = vmul.f32 %v1904, %v1694
        %v1969 = vmul.f32 %v1905, %v1696
        %v1970 = vmul.f32 %v1906, %v1698
        %v1971 = vmul.f32 %v1907, %v1700
        %v1972 = vmul.f32 %v1908, %v1704
        %v1973 = vmul.f32 %v1909, %v1706
        %v1974 = vmul.f32 %v1910, %v1708
        %v1975 = vmul.f32 %v1911, %v1710
        %v1976 = vmul.f32 %v1912, %v1714
        %v1977 = vmul.f32 %v1913, %v1716
        %v1978 = vmul.f32 %v1914, %v1718
        %v1979 = vmul.f32 %v1915, %v1720
        %v1980 = vmul.f32 %v1916, %v1724
        %v1981 = vmul.f32 %v1917, %v1726
        %v1982 = vmul.f32 %v1918, %v1728
        %v1983 = vmul.f32 %v1919, %v1730
        %v1984 = vmul.f32 %v1920, %v1734
        %v1985 = vmul.f32 %v1921, %v1736
        %v1986 = vmul.f32 %v1922, %v1738
        %v1987 = vmul.f32 %v1923, %v1740
        %v1988 = vmul.f32 %v1924, %v1744
        %v1989 = vmul.f32 %v1925, %v1746
        %v1990 = vmul.f32 %v1926, %v1748
        %v1991 = vmul.f32 %v1927, %v1750
        %v1992 = vmul.f32 %v1928, %v1754
        %v1993 = vmul.f32 %v1929, %v1756
        %v1994 = vmul.f32 %v1930, %v1758
        %v1995 = vmul.f32 %v1931, %v1760
        %v1996 = vmul.f32 %v1932, %v1764
        %v1997 = vmul.f32 %v1933, %v1766
        %v1998 = vmul.f32 %v1934, %v1768
        %v1999 = vmul.f32 %v1935, %v1770
        %v2000 = vmul.f32 %v1936, %v1774
        %v2001 = vmul.f32 %v1937, %v1776
        %v2002 = vmul.f32 %v1938, %v1778
        %v2003 = vmul.f32 %v1939, %v1780
        %v2004 = vmul.f32 %v1940, %v1784
        %v2005 = vmul.f32 %v1941, %v1786
        %v2006 = vmul.f32 %v1942, %v1788
        %v2007 = vmul.f32 %v1943, %v1790
        %v2008 = vmul.f32 %v1944, %v1794
        %v2009 = vmul.f32 %v1945, %v1796
        %v2010 = vmul.f32 %v1946, %v1798
        %v2011 = vmul.f32 %v1947, %v1800
        %v2012 = vmul.f32 %v1948, %v1804
        %v2013 = vmul.f32 %v1949, %v1806
        %v2014 = vmul.f32 %v1950, %v1808
        %v2015 = vmul.f32 %v1951, %v1810
        %v2016 = vmul.f32 %v1952, %v1814
        %v2017 = vmul.f32 %v1953, %v1816
        %v2018 = vmul.f32 %v1954, %v1818
        %v2019 = vmul.f32 %v1955, %v1820
        %v2020 = vmul.f32 %v1956, %v1824
        %v2021 = vmul.f32 %v1957, %v1826
        %v2022 = vmul.f32 %v1958, %v1828
        %v2023 = vmul.f32 %v1959, %v1830
        %v2024 = vmul.f32 %v1960, %v1674
        %v2025 = vmul.f32 %v1961, %v1676
        %v2026 = vmul.f32 %v1962, %v1678
        %v2027 = vmul.f32 %v1963, %v1680
        %v2028 = vmul.f32 %v1964, %v1684
        %v2029 = vmul.f32 %v1965, %v1686
        %v2030 = vmul.f32 %v1966, %v1688
        %v2031 = vmul.f32 %v1967, %v1690
        %v2032 = vmul.f32 %v1968, %v1694
        %v2033 = vmul.f32 %v1969, %v1696
        %v2034 = vmul.f32 %v1970, %v1698
        %v2035 = vmul.f32 %v1971, %v1700
        %v2036 = vmul.f32 %v1972, %v1704
        %v2037 = vmul.f32 %v1973, %v1706
        %v2038 = vmul.f32 %v1974, %v1708
        %v2039 = vmul.f32 %v1975, %v1710
        %v2040 = vmul.f32 %v1976, %v1714
        %v2041 = vmul.f32 %v1977, %v1716
        %v2042 = vmul.f32 %v1978, %v1718
        %v2043 = vmul.f32 %v1979, %v1720
        %v2044 = vmul.f32 %v1980, %v1724
        %v2045 = vmul.f32 %v1981, %v1726
        %v2046 = vmul.f32 %v1982, %v1728
        %v2047 = vmul.f32 %v1983, %v1730
        %v2048 = vmul.f32 %v1984, %v1734
        %v2049 = vmul.f32 %v1985, %v1736
        %v2050 = vmul.f32 %v1986, %v1738
        %v2051 = vmul.f32 %v1987, %v1740
        %v2052 = vmul.f32 %v1988, %v1744
        %v2053 = vmul.f32 %v1989, %v1746
        %v2054 = vmul.f32 %v1990, %v1748
        %v2055 = vmul.f32 %v1991, %v1750
        %v2056 = vmul.f32 %v1992, %v1754
        %v2057 = vmul.f32 %v1993, %v1756
        %v2058 = vmul.f32 %v1994, %v1758
        %v2059 = vmul.f32 %v1995, %v1760
        %v2060 = vmul.f32 %v1996, %v1764
        %v2061 = vmul.f32 %v1997, %v1766
        %v2062 = vmul.f32 %v1998, %v1768
        %v2063 = vmul.f32 %v1999, %v1770
        %v2064 = vmul.f32 %v2000, %v1774
        %v2065 = vmul.f32 %v2001, %v1776
        %v2066 = vmul.f32 %v2002, %v1778
        %v2067 = vmul.f32 %v2003, %v1780
        %v2068 = vmul.f32 %v2004, %v1784
        %v2069 = vmul.f32 %v2005, %v1786
        %v2070 = vmul.f32 %v2006, %v1788
        %v2071 = vmul.f32 %v2007, %v1790
        %v2072 = vmul.f32 %v2008, %v1794
        %v2073 = vmul.f32 %v2009, %v1796
        %v2074 = vmul.f32 %v2010, %v1798
        %v2075 = vmul.f32 %v2011, %v1800
        %v2076 = vmul.f32 %v2012, %v1804
        %v2077 = vmul.f32 %v2013, %v1806
        %v2078 = vmul.f32 %v2014, %v1808
        %v2079 = vmul.f32 %v2015, %v1810
        %v2080 = vmul.f32 %v2016, %v1814
        %v2081 = vmul.f32 %v2017, %v1816
        %v2082 = vmul.f32 %v2018, %v1818
        %v2083 = vmul.f32 %v2019, %v1820
        %v2084 = vmul.f32 %v2020, %v1824
        %v2085 = vmul.f32 %v2021, %v1826
        %v2086 = vmul.f32 %v2022, %v1828
        %v2087 = vmul.f32 %v2023, %v1830
        %v2088 = vadd.f32 %v1674, %v2024
        %v2089 = vadd.f32 %v1676, %v2025
        %v2090 = vadd.f32 %v1678, %v2026
        %v2091 = vadd.f32 %v1680, %v2027
        %v2092 = vadd.f32 %v1684, %v2028
        %v2093 = vadd.f32 %v1686, %v2029
        %v2094 = vadd.f32 %v1688, %v2030
        %v2095 = vadd.f32 %v1690, %v2031
        %v2096 = vadd.f32 %v1694, %v2032
        %v2097 = vadd.f32 %v1696, %v2033
        %v2098 = vadd.f32 %v1698, %v2034
        %v2099 = vadd.f32 %v1700, %v2035
        %v2100 = vadd.f32 %v1704, %v2036
        %v2101 = vadd.f32 %v1706, %v2037
        %v2102 = vadd.f32 %v1708, %v2038
        %v2103 = vadd.f32 %v1710, %v2039
        %v2104 = vadd.f32 %v1714, %v2040
        %v2105 = vadd.f32 %v1716, %v2041
        %v2106 = vadd.f32 %v1718, %v2042
        %v2107 = vadd.f32 %v1720, %v2043
        %v2108 = vadd.f32 %v1724, %v2044
        %v2109 = vadd.f32 %v1726, %v2045
        %v2110 = vadd.f32 %v1728, %v2046
        %v2111 = vadd.f32 %v1730, %v2047
        %v2112 = vadd.f32 %v1734, %v2048
        %v2113 = vadd.f32 %v1736, %v2049
        %v2114 = vadd.f32 %v1738, %v2050
        %v2115 = vadd.f32 %v1740, %v2051
        %v2116 = vadd.f32 %v1744, %v2052
        %v2117 = vadd.f32 %v1746, %v2053
        %v2118 = vadd.f32 %v1748, %v2054
        %v2119 = vadd.f32 %v1750, %v2055
        %v2120 = vadd.f32 %v1754, %v2056
        %v2121 = vadd.f32 %v1756, %v2057
        %v2122 = vadd.f32 %v1758, %v2058
        %v2123 = vadd.f32 %v1760, %v2059
        %v2124 = vadd.f32 %v1764, %v2060
        %v2125 = vadd.f32 %v1766, %v2061
        %v2126 = vadd.f32 %v1768, %v2062
        %v2127 = vadd.f32 %v1770, %v2063
        %v2128 = vadd.f32 %v1774, %v2064
        %v2129 = vadd.f32 %v1776, %v2065
        %v2130 = vadd.f32 %v1778, %v2066
        %v2131 = vadd.f32 %v1780, %v2067
        %v2132 = vadd.f32 %v1784, %v2068
        %v2133 = vadd.f32 %v1786, %v2069
        %v2134 = vadd.f32 %v1788, %v2070
        %v2135 = vadd.f32 %v1790, %v2071
        %v2136 = vadd.f32 %v1794, %v2072
        %v2137 = vadd.f32 %v1796, %v2073
        %v2138 = vadd.f32 %v1798, %v2074
        %v2139 = vadd.f32 %v1800, %v2075
        %v2140 = vadd.f32 %v1804, %v2076
        %v2141 = vadd.f32 %v1806, %v2077
        %v2142 = vadd.f32 %v1808, %v2078
        %v2143 = vadd.f32 %v1810, %v2079
        %v2144 = vadd.f32 %v1814, %v2080
        %v2145 = vadd.f32 %v1816, %v2081
        %v2146 = vadd.f32 %v1818, %v2082
        %v2147 = vadd.f32 %v1820, %v2083
        %v2148 = vadd.f32 %v1824, %v2084
        %v2149 = vadd.f32 %v1826, %v2085
        %v2150 = vadd.f32 %v1828, %v2086
        %v2151 = vadd.f32 %v1830, %v2087
        %v2152 = vmul.f32 %v2088, 0.7978846
        %v2153 = vmul.f32 %v2089, 0.7978846
        %v2154 = vmul.f32 %v2090, 0.7978846
        %v2155 = vmul.f32 %v2091, 0.7978846
        %v2156 = vmul.f32 %v2092, 0.7978846
        %v2157 = vmul.f32 %v2093, 0.7978846
        %v2158 = vmul.f32 %v2094, 0.7978846
        %v2159 = vmul.f32 %v2095, 0.7978846
        %v2160 = vmul.f32 %v2096, 0.7978846
        %v2161 = vmul.f32 %v2097, 0.7978846
        %v2162 = vmul.f32 %v2098, 0.7978846
        %v2163 = vmul.f32 %v2099, 0.7978846
        %v2164 = vmul.f32 %v2100, 0.7978846
        %v2165 = vmul.f32 %v2101, 0.7978846
        %v2166 = vmul.f32 %v2102, 0.7978846
        %v2167 = vmul.f32 %v2103, 0.7978846
        %v2168 = vmul.f32 %v2104, 0.7978846
        %v2169 = vmul.f32 %v2105, 0.7978846
        %v2170 = vmul.f32 %v2106, 0.7978846
        %v2171 = vmul.f32 %v2107, 0.7978846
        %v2172 = vmul.f32 %v2108, 0.7978846
        %v2173 = vmul.f32 %v2109, 0.7978846
        %v2174 = vmul.f32 %v2110, 0.7978846
        %v2175 = vmul.f32 %v2111, 0.7978846
        %v2176 = vmul.f32 %v2112, 0.7978846
        %v2177 = vmul.f32 %v2113, 0.7978846
        %v2178 = vmul.f32 %v2114, 0.7978846
        %v2179 = vmul.f32 %v2115, 0.7978846
        %v2180 = vmul.f32 %v2116, 0.7978846
        %v2181 = vmul.f32 %v2117, 0.7978846
        %v2182 = vmul.f32 %v2118, 0.7978846
        %v2183 = vmul.f32 %v2119, 0.7978846
        %v2184 = vmul.f32 %v2120, 0.7978846
        %v2185 = vmul.f32 %v2121, 0.7978846
        %v2186 = vmul.f32 %v2122, 0.7978846
        %v2187 = vmul.f32 %v2123, 0.7978846
        %v2188 = vmul.f32 %v2124, 0.7978846
        %v2189 = vmul.f32 %v2125, 0.7978846
        %v2190 = vmul.f32 %v2126, 0.7978846
        %v2191 = vmul.f32 %v2127, 0.7978846
        %v2192 = vmul.f32 %v2128, 0.7978846
        %v2193 = vmul.f32 %v2129, 0.7978846
        %v2194 = vmul.f32 %v2130, 0.7978846
        %v2195 = vmul.f32 %v2131, 0.7978846
        %v2196 = vmul.f32 %v2132, 0.7978846
        %v2197 = vmul.f32 %v2133, 0.7978846
        %v2198 = vmul.f32 %v2134, 0.7978846
        %v2199 = vmul.f32 %v2135, 0.7978846
        %v2200 = vmul.f32 %v2136, 0.7978846
        %v2201 = vmul.f32 %v2137, 0.7978846
        %v2202 = vmul.f32 %v2138, 0.7978846
        %v2203 = vmul.f32 %v2139, 0.7978846
        %v2204 = vmul.f32 %v2140, 0.7978846
        %v2205 = vmul.f32 %v2141, 0.7978846
        %v2206 = vmul.f32 %v2142, 0.7978846
        %v2207 = vmul.f32 %v2143, 0.7978846
        %v2208 = vmul.f32 %v2144, 0.7978846
        %v2209 = vmul.f32 %v2145, 0.7978846
        %v2210 = vmul.f32 %v2146, 0.7978846
        %v2211 = vmul.f32 %v2147, 0.7978846
        %v2212 = vmul.f32 %v2148, 0.7978846
        %v2213 = vmul.f32 %v2149, 0.7978846
        %v2214 = vmul.f32 %v2150, 0.7978846
        %v2215 = vmul.f32 %v2151, 0.7978846
        %v2216 = vtanh.pop %v2152
        %v2217 = vtanh.pop %v2153
        %v2218 = vtanh.pop %v2154
        %v2219 = vtanh.pop %v2155
        %v2220 = vtanh.pop %v2156
        %v2221 = vtanh.pop %v2157
        %v2222 = vtanh.pop %v2158
        %v2223 = vtanh.pop %v2159
        %v2224 = vtanh.pop %v2160
        %v2225 = vtanh.pop %v2161
        %v2226 = vtanh.pop %v2162
        %v2227 = vtanh.pop %v2163
        %v2228 = vtanh.pop %v2164
        %v2229 = vtanh.pop %v2165
        %v2230 = vtanh.pop %v2166
        %v2231 = vtanh.pop %v2167
        %v2232 = vtanh.pop %v2168
        %v2233 = vtanh.pop %v2169
        %v2234 = vtanh.pop %v2170
        %v2235 = vtanh.pop %v2171
        %v2236 = vtanh.pop %v2172
        %v2237 = vtanh.pop %v2173
        %v2238 = vtanh.pop %v2174
        %v2239 = vtanh.pop %v2175
        %v2240 = vtanh.pop %v2176
        %v2241 = vtanh.pop %v2177
        %v2242 = vtanh.pop %v2178
        %v2243 = vtanh.pop %v2179
        %v2244 = vtanh.pop %v2180
        %v2245 = vtanh.pop %v2181
        %v2246 = vtanh.pop %v2182
        %v2247 = vtanh.pop %v2183
        %v2248 = vtanh.pop %v2184
        %v2249 = vtanh.pop %v2185
        %v2250 = vtanh.pop %v2186
        %v2251 = vtanh.pop %v2187
        %v2252 = vtanh.pop %v2188
        %v2253 = vtanh.pop %v2189
        %v2254 = vtanh.pop %v2190
        %v2255 = vtanh.pop %v2191
        %v2256 = vtanh.pop %v2192
        %v2257 = vtanh.pop %v2193
        %v2258 = vtanh.pop %v2194
        %v2259 = vtanh.pop %v2195
        %v2260 = vtanh.pop %v2196
        %v2261 = vtanh.pop %v2197
        %v2262 = vtanh.pop %v2198
        %v2263 = vtanh.pop %v2199
        %v2264 = vtanh.pop %v2200
        %v2265 = vtanh.pop %v2201
        %v2266 = vtanh.pop %v2202
        %v2267 = vtanh.pop %v2203
        %v2268 = vtanh.pop %v2204
        %v2269 = vtanh.pop %v2205
        %v2270 = vtanh.pop %v2206
        %v2271 = vtanh.pop %v2207
        %v2272 = vtanh.pop %v2208
        %v2273 = vtanh.pop %v2209
        %v2274 = vtanh.pop %v2210
        %v2275 = vtanh.pop %v2211
        %v2276 = vtanh.pop %v2212
        %v2277 = vtanh.pop %v2213
        %v2278 = vtanh.pop %v2214
        %v2279 = vtanh.pop %v2215
        %v2280 = vadd.f32 %v2216, 1.0
        %v2281 = vadd.f32 %v2217, 1.0
        %v2282 = vadd.f32 %v2218, 1.0
        %v2283 = vadd.f32 %v2219, 1.0
        %v2284 = vadd.f32 %v2220, 1.0
        %v2285 = vadd.f32 %v2221, 1.0
        %v2286 = vadd.f32 %v2222, 1.0
        %v2287 = vadd.f32 %v2223, 1.0
        %v2288 = vadd.f32 %v2224, 1.0
        %v2289 = vadd.f32 %v2225, 1.0
        %v2290 = vadd.f32 %v2226, 1.0
        %v2291 = vadd.f32 %v2227, 1.0
        %v2292 = vadd.f32 %v2228, 1.0
        %v2293 = vadd.f32 %v2229, 1.0
        %v2294 = vadd.f32 %v2230, 1.0
        %v2295 = vadd.f32 %v2231, 1.0
        %v2296 = vadd.f32 %v2232, 1.0
        %v2297 = vadd.f32 %v2233, 1.0
        %v2298 = vadd.f32 %v2234, 1.0
        %v2299 = vadd.f32 %v2235, 1.0
        %v2300 = vadd.f32 %v2236, 1.0
        %v2301 = vadd.f32 %v2237, 1.0
        %v2302 = vadd.f32 %v2238, 1.0
        %v2303 = vadd.f32 %v2239, 1.0
        %v2304 = vadd.f32 %v2240, 1.0
        %v2305 = vadd.f32 %v2241, 1.0
        %v2306 = vadd.f32 %v2242, 1.0
        %v2307 = vadd.f32 %v2243, 1.0
        %v2308 = vadd.f32 %v2244, 1.0
        %v2309 = vadd.f32 %v2245, 1.0
        %v2310 = vadd.f32 %v2246, 1.0
        %v2311 = vadd.f32 %v2247, 1.0
        %v2312 = vadd.f32 %v2248, 1.0
        %v2313 = vadd.f32 %v2249, 1.0
        %v2314 = vadd.f32 %v2250, 1.0
        %v2315 = vadd.f32 %v2251, 1.0
        %v2316 = vadd.f32 %v2252, 1.0
        %v2317 = vadd.f32 %v2253, 1.0
        %v2318 = vadd.f32 %v2254, 1.0
        %v2319 = vadd.f32 %v2255, 1.0
        %v2320 = vadd.f32 %v2256, 1.0
        %v2321 = vadd.f32 %v2257, 1.0
        %v2322 = vadd.f32 %v2258, 1.0
        %v2323 = vadd.f32 %v2259, 1.0
        %v2324 = vadd.f32 %v2260, 1.0
        %v2325 = vadd.f32 %v2261, 1.0
        %v2326 = vadd.f32 %v2262, 1.0
        %v2327 = vadd.f32 %v2263, 1.0
        %v2328 = vadd.f32 %v2264, 1.0
        %v2329 = vadd.f32 %v2265, 1.0
        %v2330 = vadd.f32 %v2266, 1.0
        %v2331 = vadd.f32 %v2267, 1.0
        %v2332 = vadd.f32 %v2268, 1.0
        %v2333 = vadd.f32 %v2269, 1.0
        %v2334 = vadd.f32 %v2270, 1.0
        %v2335 = vadd.f32 %v2271, 1.0
        %v2336 = vadd.f32 %v2272, 1.0
        %v2337 = vadd.f32 %v2273, 1.0
        %v2338 = vadd.f32 %v2274, 1.0
        %v2339 = vadd.f32 %v2275, 1.0
        %v2340 = vadd.f32 %v2276, 1.0
        %v2341 = vadd.f32 %v2277, 1.0
        %v2342 = vadd.f32 %v2278, 1.0
        %v2343 = vadd.f32 %v2279, 1.0
        %v2344 = vmul.f32 %v1832, %v2280
        %v2345 = vmul.f32 %v1833, %v2281
        %v2346 = vmul.f32 %v1834, %v2282
        %v2347 = vmul.f32 %v1835, %v2283
        %v2348 = vmul.f32 %v1836, %v2284
        %v2349 = vmul.f32 %v1837, %v2285
        %v2350 = vmul.f32 %v1838, %v2286
        %v2351 = vmul.f32 %v1839, %v2287
        %v2352 = vmul.f32 %v1840, %v2288
        %v2353 = vmul.f32 %v1841, %v2289
        %v2354 = vmul.f32 %v1842, %v2290
        %v2355 = vmul.f32 %v1843, %v2291
        %v2356 = vmul.f32 %v1844, %v2292
        %v2357 = vmul.f32 %v1845, %v2293
        %v2358 = vmul.f32 %v1846, %v2294
        %v2359 = vmul.f32 %v1847, %v2295
        %v2360 = vmul.f32 %v1848, %v2296
        %v2361 = vmul.f32 %v1849, %v2297
        %v2362 = vmul.f32 %v1850, %v2298
        %v2363 = vmul.f32 %v1851, %v2299
        %v2364 = vmul.f32 %v1852, %v2300
        %v2365 = vmul.f32 %v1853, %v2301
        %v2366 = vmul.f32 %v1854, %v2302
        %v2367 = vmul.f32 %v1855, %v2303
        %v2368 = vmul.f32 %v1856, %v2304
        %v2369 = vmul.f32 %v1857, %v2305
        %v2370 = vmul.f32 %v1858, %v2306
        %v2371 = vmul.f32 %v1859, %v2307
        %v2372 = vmul.f32 %v1860, %v2308
        %v2373 = vmul.f32 %v1861, %v2309
        %v2374 = vmul.f32 %v1862, %v2310
        %v2375 = vmul.f32 %v1863, %v2311
        %v2376 = vmul.f32 %v1864, %v2312
        %v2377 = vmul.f32 %v1865, %v2313
        %v2378 = vmul.f32 %v1866, %v2314
        %v2379 = vmul.f32 %v1867, %v2315
        %v2380 = vmul.f32 %v1868, %v2316
        %v2381 = vmul.f32 %v1869, %v2317
        %v2382 = vmul.f32 %v1870, %v2318
        %v2383 = vmul.f32 %v1871, %v2319
        %v2384 = vmul.f32 %v1872, %v2320
        %v2385 = vmul.f32 %v1873, %v2321
        %v2386 = vmul.f32 %v1874, %v2322
        %v2387 = vmul.f32 %v1875, %v2323
        %v2388 = vmul.f32 %v1876, %v2324
        %v2389 = vmul.f32 %v1877, %v2325
        %v2390 = vmul.f32 %v1878, %v2326
        %v2391 = vmul.f32 %v1879, %v2327
        %v2392 = vmul.f32 %v1880, %v2328
        %v2393 = vmul.f32 %v1881, %v2329
        %v2394 = vmul.f32 %v1882, %v2330
        %v2395 = vmul.f32 %v1883, %v2331
        %v2396 = vmul.f32 %v1884, %v2332
        %v2397 = vmul.f32 %v1885, %v2333
        %v2398 = vmul.f32 %v1886, %v2334
        %v2399 = vmul.f32 %v1887, %v2335
        %v2400 = vmul.f32 %v1888, %v2336
        %v2401 = vmul.f32 %v1889, %v2337
        %v2402 = vmul.f32 %v1890, %v2338
        %v2403 = vmul.f32 %v1891, %v2339
        %v2404 = vmul.f32 %v1892, %v2340
        %v2405 = vmul.f32 %v1893, %v2341
        %v2406 = vmul.f32 %v1894, %v2342
        %v2407 = vmul.f32 %v1895, %v2343
        %v2408 = vpack.c.bf16 %v2346, %v2344
        %v2409 = vpack.c.bf16 %v2347, %v2345
        %v2410 = vpack.c.bf16 %v2350, %v2348
        %v2411 = vpack.c.bf16 %v2351, %v2349
        %v2412 = vpack.c.bf16 %v2354, %v2352
        %v2413 = vpack.c.bf16 %v2355, %v2353
        %v2414 = vpack.c.bf16 %v2358, %v2356
        %v2415 = vpack.c.bf16 %v2359, %v2357
        %v2416 = vpack.c.bf16 %v2362, %v2360
        %v2417 = vpack.c.bf16 %v2363, %v2361
        %v2418 = vpack.c.bf16 %v2366, %v2364
        %v2419 = vpack.c.bf16 %v2367, %v2365
        %v2420 = vpack.c.bf16 %v2370, %v2368
        %v2421 = vpack.c.bf16 %v2371, %v2369
        %v2422 = vpack.c.bf16 %v2374, %v2372
        %v2423 = vpack.c.bf16 %v2375, %v2373
        %v2424 = vpack.c.bf16 %v2378, %v2376
        %v2425 = vpack.c.bf16 %v2379, %v2377
        %v2426 = vpack.c.bf16 %v2382, %v2380
        %v2427 = vpack.c.bf16 %v2383, %v2381
        %v2428 = vpack.c.bf16 %v2386, %v2384
        %v2429 = vpack.c.bf16 %v2387, %v2385
        %v2430 = vpack.c.bf16 %v2390, %v2388
        %v2431 = vpack.c.bf16 %v2391, %v2389
        %v2432 = vpack.c.bf16 %v2394, %v2392
        %v2433 = vpack.c.bf16 %v2395, %v2393
        %v2434 = vpack.c.bf16 %v2398, %v2396
        %v2435 = vpack.c.bf16 %v2399, %v2397
        %v2436 = vpack.c.bf16 %v2402, %v2400
        %v2437 = vpack.c.bf16 %v2403, %v2401
        %v2438 = vpack.c.bf16 %v2406, %v2404
        %v2439 = vpack.c.bf16 %v2407, %v2405
        %v2440 = vld [vmem:[#allocation8] sm:$0xff]
        %v2441 = vld [vmem:[#allocation8 + $0x8] sm:$0xff]
        %v2442 = vld [vmem:[#allocation8 + $0x10] sm:$0xff]
        %v2443 = vld [vmem:[#allocation8 + $0x18] sm:$0xff]
        %v2444 = vld [vmem:[#allocation8 + $0x20] sm:$0xff]
        %v2445 = vld [vmem:[#allocation8 + $0x28] sm:$0xff]
        %v2446 = vld [vmem:[#allocation8 + $0x30] sm:$0xff]
        %v2447 = vld [vmem:[#allocation8 + $0x38] sm:$0xff]
        %v2448 = vld [vmem:[#allocation8 + $0x40] sm:$0xff]
        %v2449 = vld [vmem:[#allocation8 + $0x48] sm:$0xff]
        %v2450 = vld [vmem:[#allocation8 + $0x50] sm:$0xff]
        %v2451 = vld [vmem:[#allocation8 + $0x58] sm:$0xff]
        %v2452 = vld [vmem:[#allocation8 + $0x60] sm:$0xff]
        %v2453 = vld [vmem:[#allocation8 + $0x68] sm:$0xff]
        %v2454 = vld [vmem:[#allocation8 + $0x70] sm:$0xff]
        %v2455 = vld [vmem:[#allocation8 + $0x78] sm:$0xff]
        %v2456 = vld [vmem:[%s12] sm:$0x1]
        %v2458 = vlaneseq
        %v2459 = vshrl.u32 %v2458, 7
        %v2460 = vsub.s32 0, %v2459
        %v2461 = vrot.slane %v2456, %v2460
        %v2479 = vunpack.c.l.b16 %v2440
        %v2480 = vunpack.c.h.b16 %v2440
        %v2481 = vunpack.c.l.b16 %v2441
        %v2482 = vunpack.c.h.b16 %v2441
        %v2483 = vunpack.c.l.b16 %v2442
        %v2484 = vunpack.c.h.b16 %v2442
        %v2485 = vunpack.c.l.b16 %v2443
        %v2486 = vunpack.c.h.b16 %v2443
        %v2487 = vunpack.c.l.b16 %v2444
        %v2488 = vunpack.c.h.b16 %v2444
        %v2489 = vunpack.c.l.b16 %v2445
        %v2490 = vunpack.c.h.b16 %v2445
        %v2491 = vunpack.c.l.b16 %v2446
        %v2492 = vunpack.c.h.b16 %v2446
        %v2493 = vunpack.c.l.b16 %v2447
        %v2494 = vunpack.c.h.b16 %v2447
        %v2495 = vunpack.c.l.b16 %v2448
        %v2496 = vunpack.c.h.b16 %v2448
        %v2497 = vunpack.c.l.b16 %v2449
        %v2498 = vunpack.c.h.b16 %v2449
        %v2499 = vunpack.c.l.b16 %v2450
        %v2500 = vunpack.c.h.b16 %v2450
        %v2501 = vunpack.c.l.b16 %v2451
        %v2502 = vunpack.c.h.b16 %v2451
        %v2503 = vunpack.c.l.b16 %v2452
        %v2504 = vunpack.c.h.b16 %v2452
        %v2505 = vunpack.c.l.b16 %v2453
        %v2506 = vunpack.c.h.b16 %v2453
        %v2507 = vunpack.c.l.b16 %v2454
        %v2508 = vunpack.c.h.b16 %v2454
        %v2509 = vunpack.c.l.b16 %v2455
        %v2510 = vunpack.c.h.b16 %v2455
        %v2511 = vpack.c.b16 %v2481, %v2479
        %v2512 = vpack.c.b16 %v2482, %v2480
        %v2513 = vpack.c.b16 %v2485, %v2483
        %v2514 = vpack.c.b16 %v2486, %v2484
        %v2515 = vpack.c.b16 %v2489, %v2487
        %v2516 = vpack.c.b16 %v2490, %v2488
        %v2517 = vpack.c.b16 %v2493, %v2491
        %v2518 = vpack.c.b16 %v2494, %v2492
        %v2519 = vpack.c.b16 %v2497, %v2495
        %v2520 = vpack.c.b16 %v2498, %v2496
        %v2521 = vpack.c.b16 %v2501, %v2499
        %v2522 = vpack.c.b16 %v2502, %v2500
        %v2523 = vpack.c.b16 %v2505, %v2503
        %v2524 = vpack.c.b16 %v2506, %v2504
        %v2525 = vpack.c.b16 %v2509, %v2507
        %v2526 = vpack.c.b16 %v2510, %v2508
        %2543 = vmatprep.subr.bf16.mxu0 %v2512
        %2544 = vmatpush1.bf16.xpose.msra.mxu0 %v2511
        %2545 = vmatprep.subr.bf16.mxu0 %v2514
        %2546 = vmatpush1.bf16.xpose.msra.mxu0 %v2513
        %2547 = vmatprep.subr.bf16.mxu0 %v2516
        %2548 = vmatpush1.bf16.xpose.msra.mxu0 %v2515
        %2549 = vmatprep.subr.bf16.mxu0 %v2518
        %2550 = vmatpush1.bf16.xpose.msra.mxu0 %v2517
        %2551 = vmatprep.subr.bf16.mxu0 %v2520
        %2552 = vmatpush1.bf16.xpose.msra.mxu0 %v2519
        %2553 = vmatprep.subr.bf16.mxu0 %v2522
        %2554 = vmatpush1.bf16.xpose.msra.mxu0 %v2521
        %2555 = vmatprep.subr.bf16.mxu0 %v2524
        %2556 = vmatpush1.bf16.xpose.msra.mxu0 %v2523
        %2557 = vmatprep.subr.bf16.mxu0 %v2526
        %2558 = vmatpush1.bf16.xpose.msra.mxu0 %v2525
        %2559 = vmatprep.subr.bf16.mxu0 0
        %2560 = vmatpush1.bf16.xpose.msra.mxu0 0
        %2561 = vmatprep.subr.bf16.mxu0 0
        %2562 = vmatpush1.bf16.xpose.msra.mxu0 0
        %2563 = vmatprep.subr.bf16.mxu0 0
        %2564 = vmatpush1.bf16.xpose.msra.mxu0 0
        %2565 = vmatprep.subr.bf16.mxu0 0
        %2566 = vmatpush1.bf16.xpose.msra.mxu0 0
        %2567 = vmatprep.subr.bf16.mxu0 0
        %2568 = vmatpush1.bf16.xpose.msra.mxu0 0
        %2569 = vmatprep.subr.bf16.mxu0 0
        %2570 = vmatpush1.bf16.xpose.msra.mxu0 0
        %2571 = vmatprep.subr.bf16.mxu0 0
        %2572 = vmatpush1.bf16.xpose.msra.mxu0 0
        %2573 = vmatprep.subr.bf16.mxu0 0
        %2574 = vmatpush1.bf16.xpose.msra.mxu0 0
        %2575 = vmatprep.mubr.bf16.mxu0 %v2409
        %2576 = vmatmul.mubr.bf16.gmra.mrb[0].mxu0 %v2408
        %v2577 = vpop.f32.mrb[0].mxu0
        %v2578 = vadd.f32 %v2461, %v2577
        %v2579 = vpop.f32.mrb[0].mxu0
        %v2580 = vpop.f32.mrb[0].mxu0
        %v2581 = vadd.f32 %v2461, %v2580
        %v2582 = vpop.f32.mrb[0].mxu0
        %2583 = vmatprep.mubr.bf16.mxu0 %v2411
        %2584 = vmatmul.mubr.bf16.gmra.mrb[0].mxu0 %v2410
        %v2585 = vpop.f32.mrb[0].mxu0
        %v2586 = vadd.f32 %v2461, %v2585
        %v2587 = vpop.f32.mrb[0].mxu0
        %v2588 = vpop.f32.mrb[0].mxu0
        %v2589 = vadd.f32 %v2461, %v2588
        %v2590 = vpop.f32.mrb[0].mxu0
        %2591 = vmatprep.mubr.bf16.mxu0 %v2413
        %2592 = vmatmul.mubr.bf16.gmra.mrb[0].mxu0 %v2412
        %v2593 = vpop.f32.mrb[0].mxu0
        %v2594 = vadd.f32 %v2461, %v2593
        %v2595 = vpop.f32.mrb[0].mxu0
        %v2596 = vpop.f32.mrb[0].mxu0
        %v2597 = vadd.f32 %v2461, %v2596
        %v2598 = vpop.f32.mrb[0].mxu0
        %2599 = vmatprep.mubr.bf16.mxu0 %v2415
        %2600 = vmatmul.mubr.bf16.gmra.mrb[0].mxu0 %v2414
        %v2601 = vpop.f32.mrb[0].mxu0
        %v2602 = vadd.f32 %v2461, %v2601
        %v2603 = vpop.f32.mrb[0].mxu0
        %v2604 = vpop.f32.mrb[0].mxu0
        %v2605 = vadd.f32 %v2461, %v2604
        %v2606 = vpop.f32.mrb[0].mxu0
        %2607 = vmatprep.mubr.bf16.mxu0 %v2417
        %2608 = vmatmul.mubr.bf16.gmra.mrb[0].mxu0 %v2416
        %v2609 = vpop.f32.mrb[0].mxu0
        %v2610 = vadd.f32 %v2461, %v2609
        %v2611 = vpop.f32.mrb[0].mxu0
        %v2612 = vpop.f32.mrb[0].mxu0
        %v2613 = vadd.f32 %v2461, %v2612
        %v2614 = vpop.f32.mrb[0].mxu0
        %2615 = vmatprep.mubr.bf16.mxu0 %v2419
        %2616 = vmatmul.mubr.bf16.gmra.mrb[0].mxu0 %v2418
        %v2617 = vpop.f32.mrb[0].mxu0
        %v2618 = vadd.f32 %v2461, %v2617
        %v2619 = vpop.f32.mrb[0].mxu0
        %v2620 = vpop.f32.mrb[0].mxu0
        %v2621 = vadd.f32 %v2461, %v2620
        %v2622 = vpop.f32.mrb[0].mxu0
        %2623 = vmatprep.mubr.bf16.mxu0 %v2421
        %2624 = vmatmul.mubr.bf16.gmra.mrb[0].mxu0 %v2420
        %v2625 = vpop.f32.mrb[0].mxu0
        %v2626 = vadd.f32 %v2461, %v2625
        %v2627 = vpop.f32.mrb[0].mxu0
        %v2628 = vpop.f32.mrb[0].mxu0
        %v2629 = vadd.f32 %v2461, %v2628
        %v2630 = vpop.f32.mrb[0].mxu0
        %2631 = vmatprep.mubr.bf16.mxu0 %v2423
        %2632 = vmatmul.mubr.bf16.gmra.mrb[0].mxu0 %v2422
        %v2633 = vpop.f32.mrb[0].mxu0
        %v2634 = vadd.f32 %v2461, %v2633
        %v2635 = vpop.f32.mrb[0].mxu0
        %v2636 = vpop.f32.mrb[0].mxu0
        %v2637 = vadd.f32 %v2461, %v2636
        %v2638 = vpop.f32.mrb[0].mxu0
        %2639 = vmatprep.mubr.bf16.mxu0 %v2425
        %2640 = vmatmul.mubr.bf16.gmra.mrb[0].mxu0 %v2424
        %v2641 = vpop.f32.mrb[0].mxu0
        %v2642 = vadd.f32 %v2461, %v2641
        %v2643 = vpop.f32.mrb[0].mxu0
        %v2644 = vpop.f32.mrb[0].mxu0
        %v2645 = vadd.f32 %v2461, %v2644
        %v2646 = vpop.f32.mrb[0].mxu0
        %2647 = vmatprep.mubr.bf16.mxu0 %v2427
        %2648 = vmatmul.mubr.bf16.gmra.mrb[0].mxu0 %v2426
        %v2649 = vpop.f32.mrb[0].mxu0
        %v2650 = vadd.f32 %v2461, %v2649
        %v2651 = vpop.f32.mrb[0].mxu0
        %v2652 = vpop.f32.mrb[0].mxu0
        %v2653 = vadd.f32 %v2461, %v2652
        %v2654 = vpop.f32.mrb[0].mxu0
        %2655 = vmatprep.mubr.bf16.mxu0 %v2429
        %2656 = vmatmul.mubr.bf16.gmra.mrb[0].mxu0 %v2428
        %v2657 = vpop.f32.mrb[0].mxu0
        %v2658 = vadd.f32 %v2461, %v2657
        %v2659 = vpop.f32.mrb[0].mxu0
        %v2660 = vpop.f32.mrb[0].mxu0
        %v2661 = vadd.f32 %v2461, %v2660
        %v2662 = vpop.f32.mrb[0].mxu0
        %2663 = vmatprep.mubr.bf16.mxu0 %v2431
        %2664 = vmatmul.mubr.bf16.gmra.mrb[0].mxu0 %v2430
        %v2665 = vpop.f32.mrb[0].mxu0
        %v2666 = vadd.f32 %v2461, %v2665
        %v2667 = vpop.f32.mrb[0].mxu0
        %v2668 = vpop.f32.mrb[0].mxu0
        %v2669 = vadd.f32 %v2461, %v2668
        %v2670 = vpop.f32.mrb[0].mxu0
        %2671 = vmatprep.mubr.bf16.mxu0 %v2433
        %2672 = vmatmul.mubr.bf16.gmra.mrb[0].mxu0 %v2432
        %v2673 = vpop.f32.mrb[0].mxu0
        %v2674 = vadd.f32 %v2461, %v2673
        %v2675 = vpop.f32.mrb[0].mxu0
        %v2676 = vpop.f32.mrb[0].mxu0
        %v2677 = vadd.f32 %v2461, %v2676
        %v2678 = vpop.f32.mrb[0].mxu0
        %2679 = vmatprep.mubr.bf16.mxu0 %v2435
        %2680 = vmatmul.mubr.bf16.gmra.mrb[0].mxu0 %v2434
        %v2681 = vpop.f32.mrb[0].mxu0
        %v2682 = vadd.f32 %v2461, %v2681
        %v2683 = vpop.f32.mrb[0].mxu0
        %v2684 = vpop.f32.mrb[0].mxu0
        %v2685 = vadd.f32 %v2461, %v2684
        %v2686 = vpop.f32.mrb[0].mxu0
        %2687 = vmatprep.mubr.bf16.mxu0 %v2437
        %2688 = vmatmul.mubr.bf16.gmra.mrb[0].mxu0 %v2436
        %v2689 = vpop.f32.mrb[0].mxu0
        %v2690 = vadd.f32 %v2461, %v2689
        %v2691 = vpop.f32.mrb[0].mxu0
        %v2692 = vpop.f32.mrb[0].mxu0
        %v2693 = vadd.f32 %v2461, %v2692
        %v2694 = vpop.f32.mrb[0].mxu0
        %2695 = vmatprep.mubr.bf16.mxu0 %v2439
        %2696 = vmatmul.mubr.bf16.gmra.mrb[0].mxu0 %v2438
        %v2697 = vpop.f32.mrb[0].mxu0
        %v2698 = vadd.f32 %v2461, %v2697
        %v2699 = vpop.f32.mrb[0].mxu0
        %v2700 = vpop.f32.mrb[0].mxu0
        %v2701 = vadd.f32 %v2461, %v2700
        %v2702 = vpop.f32.mrb[0].mxu0
        %2703 = vdwg.mxu0
        %v2704 = vld [vmem:[%s8] sm:$0x1]
        %v2706 = vlaneseq
        %v2707 = vshrl.u32 %v2706, 7
        %v2708 = vsub.s32 0, %v2707
        %v2709 = vrot.slane %v2704, %v2708
        %v2711 = vmul.f32 %v2709, %v2578
        %v2712 = vmul.f32 %v2709, %v2581
        %v2713 = vmul.f32 %v2709, %v2586
        %v2714 = vmul.f32 %v2709, %v2589
        %v2715 = vmul.f32 %v2709, %v2594
        %v2716 = vmul.f32 %v2709, %v2597
        %v2717 = vmul.f32 %v2709, %v2602
        %v2718 = vmul.f32 %v2709, %v2605
        %v2719 = vmul.f32 %v2709, %v2610
        %v2720 = vmul.f32 %v2709, %v2613
        %v2721 = vmul.f32 %v2709, %v2618
        %v2722 = vmul.f32 %v2709, %v2621
        %v2723 = vmul.f32 %v2709, %v2626
        %v2724 = vmul.f32 %v2709, %v2629
        %v2725 = vmul.f32 %v2709, %v2634
        %v2726 = vmul.f32 %v2709, %v2637
        %v2727 = vmul.f32 %v2709, %v2642
        %v2728 = vmul.f32 %v2709, %v2645
        %v2729 = vmul.f32 %v2709, %v2650
        %v2730 = vmul.f32 %v2709, %v2653
        %v2731 = vmul.f32 %v2709, %v2658
        %v2732 = vmul.f32 %v2709, %v2661
        %v2733 = vmul.f32 %v2709, %v2666
        %v2734 = vmul.f32 %v2709, %v2669
        %v2735 = vmul.f32 %v2709, %v2674
        %v2736 = vmul.f32 %v2709, %v2677
        %v2737 = vmul.f32 %v2709, %v2682
        %v2738 = vmul.f32 %v2709, %v2685
        %v2739 = vmul.f32 %v2709, %v2690
        %v2740 = vmul.f32 %v2709, %v2693
        %v2741 = vmul.f32 %v2709, %v2698
        %v2742 = vmul.f32 %v2709, %v2701
        %v2743 = vadd.f32 %v1451, %v2711
        %v2744 = vadd.f32 %v1452, %v2712
        %v2745 = vadd.f32 %v1453, %v2713
        %v2746 = vadd.f32 %v1454, %v2714
        %v2747 = vadd.f32 %v1455, %v2715
        %v2748 = vadd.f32 %v1456, %v2716
        %v2749 = vadd.f32 %v1457, %v2717
        %v2750 = vadd.f32 %v1458, %v2718
        %v2751 = vadd.f32 %v1459, %v2719
        %v2752 = vadd.f32 %v1460, %v2720
        %v2753 = vadd.f32 %v1461, %v2721
        %v2754 = vadd.f32 %v1462, %v2722
        %v2755 = vadd.f32 %v1463, %v2723
        %v2756 = vadd.f32 %v1464, %v2724
        %v2757 = vadd.f32 %v1465, %v2725
        %v2758 = vadd.f32 %v1466, %v2726
        %v2759 = vadd.f32 %v1467, %v2727
        %v2760 = vadd.f32 %v1468, %v2728
        %v2761 = vadd.f32 %v1469, %v2729
        %v2762 = vadd.f32 %v1470, %v2730
        %v2763 = vadd.f32 %v1471, %v2731
        %v2764 = vadd.f32 %v1472, %v2732
        %v2765 = vadd.f32 %v1473, %v2733
        %v2766 = vadd.f32 %v1474, %v2734
        %v2767 = vadd.f32 %v1475, %v2735
        %v2768 = vadd.f32 %v1476, %v2736
        %v2769 = vadd.f32 %v1477, %v2737
        %v2770 = vadd.f32 %v1478, %v2738
        %v2771 = vadd.f32 %v1479, %v2739
        %v2772 = vadd.f32 %v1480, %v2740
        %v2773 = vadd.f32 %v1481, %v2741
        %v2774 = vadd.f32 %v1482, %v2742
        %2775 = vst [vmem:[%s503] sm:$0xff] %v2743
        %2776 = vst [vmem:[%s503 + $0x8] sm:$0xff] %v2744
        %2777 = vst [vmem:[%s503 + $0x10] sm:$0xff] %v2745
        %2778 = vst [vmem:[%s503 + $0x18] sm:$0xff] %v2746
        %2779 = vst [vmem:[%s503 + $0x20] sm:$0xff] %v2747
        %2780 = vst [vmem:[%s503 + $0x28] sm:$0xff] %v2748
        %2781 = vst [vmem:[%s503 + $0x30] sm:$0xff] %v2749
        %2782 = vst [vmem:[%s503 + $0x38] sm:$0xff] %v2750
        %2783 = vst [vmem:[%s503 + $0x40] sm:$0xff] %v2751
        %2784 = vst [vmem:[%s503 + $0x48] sm:$0xff] %v2752
        %2785 = vst [vmem:[%s503 + $0x50] sm:$0xff] %v2753
        %2786 = vst [vmem:[%s503 + $0x58] sm:$0xff] %v2754
        %2787 = vst [vmem:[%s503 + $0x60] sm:$0xff] %v2755
        %2788 = vst [vmem:[%s503 + $0x68] sm:$0xff] %v2756
        %2789 = vst [vmem:[%s503 + $0x70] sm:$0xff] %v2757
        %2790 = vst [vmem:[%s503 + $0x78] sm:$0xff] %v2758
        %2791 = vst [vmem:[%s503 + $0x80] sm:$0xff] %v2759
        %2792 = vst [vmem:[%s503 + $0x88] sm:$0xff] %v2760
        %2793 = vst [vmem:[%s503 + $0x90] sm:$0xff] %v2761
        %2794 = vst [vmem:[%s503 + $0x98] sm:$0xff] %v2762
        %2795 = vst [vmem:[%s503 + $0xa0] sm:$0xff] %v2763
        %2796 = vst [vmem:[%s503 + $0xa8] sm:$0xff] %v2764
        %2797 = vst [vmem:[%s503 + $0xb0] sm:$0xff] %v2765
        %2798 = vst [vmem:[%s503 + $0xb8] sm:$0xff] %v2766
        %2799 = vst [vmem:[%s503 + $0xc0] sm:$0xff] %v2767
        %2800 = vst [vmem:[%s503 + $0xc8] sm:$0xff] %v2768
        %2801 = vst [vmem:[%s503 + $0xd0] sm:$0xff] %v2769
        %2802 = vst [vmem:[%s503 + $0xd8] sm:$0xff] %v2770
        %2803 = vst [vmem:[%s503 + $0xe0] sm:$0xff] %v2771
        %2804 = vst [vmem:[%s503 + $0xe8] sm:$0xff] %v2772
        %2805 = vst [vmem:[%s503 + $0xf0] sm:$0xff] %v2773
        %2806 = vst [vmem:[%s503 + $0xf8] sm:$0xff] %v2774
        %s2807 = sand.u32 %s318, 1
        %s2808 = scalar_lea.sflag [#allocation4], %s2807
        %s2809 = sand.u32 %s318, 1
        %s2810 = smul.addr %s2809, 256
        %s2811 = scalar_lea.vmem [#allocation10], %s2810
        // Predicated region
        $region89: #{tpu_custom_call.1} parent=71 // pred_check
          %p2812 = pneg %p328
        $region90: #{tpu_custom_call.1} parent=71 // pred_check_branch
          %2814 = sbr.rel (%p2812) target = $region92
        $region91: #{tpu_custom_call.1} parent=71 // pred_region
          %s2815 = smul.u32 16, %s32
          %s2817 = ssub.s32 4096, 4096
          %2818 = vsyncadd %s2808, %s2817
          %s2819 = smul.addr %s2815, 2
          %s2820 = smul.addr %s2819, 128
          %s2821 = scalar_lea.hbm %s13, %s2820
          %s2822 = sshll.u32 %s2811, 4
          %s2823 = int_to_ptr.vmem [resolvable:$true] %s2822
          %2828 = dma.vmem_to_hbm [thread:$0]  %s2823, 4096, %s2821, %s2808, 128, 128, 8
        $region92: #{tpu_custom_call.1} parent=71 // pred_fallthru
          _
      $region72: #{tpu_custom_call.1} parent=5 // pred_fallthru
        _
      %p2829 = scmp.le.s32.totalorder 2, %s27
      // Predicated region
      $region93: #{tpu_custom_call.1} parent=5 // pred_check
        %p2830 = pneg %p2829
      $region94: #{tpu_custom_call.1} parent=5 // pred_check_branch
        %2832 = sbr.rel (%p2830) target = $region96
      $region95: #{tpu_custom_call.1} parent=5 // pred_region
        %s2833 = ssub.s32 %s27, 2
        // Predicated region
        $region97: #{tpu_custom_call.1} parent=95 // pred_check
          %p2834 = pneg %p334
        $region98: #{tpu_custom_call.1} parent=95 // pred_check_branch
          %2836 = sbr.rel (%p2834) target = $region100
        $region99: #{tpu_custom_call.1} parent=95 // pred_region
          %s2837 = sand.u32 %s319, 1
          %s2838 = scalar_lea.sflag [#allocation4], %s2837
          %s2839 = sand.u32 %s319, 1
          %s2840 = smul.addr %s2839, 256
          %s2841 = scalar_lea.vmem [#allocation10], %s2840
          %2842 = dma.done %s2838, 4096
        $region100: #{tpu_custom_call.1} parent=95 // pred_fallthru
          _
      $region96: #{tpu_custom_call.1} parent=5 // pred_fallthru
        _
    $region6: #{tpu_custom_call.1} parent=1 // loop_footer
      %s31 = sadd.s32 1, %s27
    $region7: #{tpu_custom_call.1} parent=1 // loop_footer_branch
      %26 = sbr.rel target = $region3
    $region8: #{tpu_custom_call.1} parent=1 // loop_exit
      _
    %2843 = vsyncpa [#allocation3], 1
    %s2844 = scalar_lea.sflag [#allocation3], 1
    %2845 = vsyncpa %s2844, 1
    %2846 = vsyncpa [#allocation6], 1
    %2847 = vsyncpa [#allocation9], 1
    %2848 = vsyncpa [#allocation4], 1
    %s2849 = scalar_lea.sflag [#allocation4], 1
    %2850 = vsyncpa %s2849, 1

</llo_original>
